<compile_context>
chip_gen: v5e
topology: v5e:2x2
jax: 0.10.0
libtpu: 0.0.40
codegen_flags: <defaults>
</compile_context>

<pallas_src>
import functools

import jax
import jax.numpy as jnp
from jax.experimental import pallas as pl
from jax.experimental.pallas import tpu as pltpu


def _leaky(x, slope=0.01):
    return jnp.where(x > 0, x, slope * x)


# ---------------------------------------------------------------------------
# One-time probe: does pltpu.roll lower here and match jnp.roll semantics?
# ---------------------------------------------------------------------------
_ROLL_PROBE = {"done": False, "use_xlu_roll": False}


def _probe_pltpu_roll():
    if _ROLL_PROBE["done"]:
        return _ROLL_PROBE["use_xlu_roll"]
    ok = False
    try:
        xp_ = jnp.arange(8 * 256, dtype=jnp.float32).reshape(8, 256)

        def k(x_ref, o_ref):
            o_ref[...] = pltpu.roll(x_ref[...], 3, axis=1)

        got = pl.pallas_call(
            k, out_shape=jax.ShapeDtypeStruct((8, 256), jnp.float32))(xp_)
        ok = bool(jnp.array_equal(got, jnp.roll(xp_, 3, axis=1)))
    except Exception:  # lowering not supported -> fall back to jnp.roll shifts
        ok = False
    _ROLL_PROBE["done"] = True
    _ROLL_PROBE["use_xlu_roll"] = ok
    return ok


# ---------------------------------------------------------------------------
# Pallas kernel: one grid step = Bb batch samples, layout (C, H*Bb*W) with
# lane index = h*(Bb*W) + b*W + w.
# ---------------------------------------------------------------------------
def bc_res_block_kernel(
    x_ref,      # (1, Cin, L)
    pvec_ref,   # (C, 15) cols: 0 b1f | 1 bpf | 2 b3 | 3..5 wt taps | 6..14 wdw taps (kh*3+kw)
    pmat_ref,   # (C, Cin + 2C) cols: [0:Cin] W1 | [Cin:Cin+C] Wp | [Cin+C:Cin+2C] W3
    ssn_ref,    # (2, C, L)    [0] = SSN scale, [1] = SSN shift (depthwise bias folded in)
    o_ref,      # (1, C, L)
    *, H, W, Bb, dilation, use_xlu_roll,
):
    d = dilation
    BbW = Bb * W
    L = H * BbW
    Cin = x_ref.shape[1]
    C = o_ref.shape[1]

    def shifted(a, delta):
        # out[..., j] = a[..., (j + delta) % L]   (XLU lane rotation when available)
        s = (-delta) % L
        if s == 0:
            return a
        if use_xlu_roll:
            return pltpu.roll(a, s, axis=1)
        return jnp.roll(a, s, axis=1)

    x = x_ref[0]                 # (Cin, L)  spatial+batch on lanes (lane-dense)
    pvec = pvec_ref[...]
    pmat = pmat_ref[...]

    W1 = pmat[:, 0:Cin]
    Wp = pmat[:, Cin:Cin + C]
    W3 = pmat[:, Cin + C:Cin + 2 * C]
    b1 = pvec[:, 0:1]
    bp = pvec[:, 1:2]
    b3 = pvec[:, 2:3]

    # Lane-index decomposition masks.  Columns (time axis) wrap every W lanes;
    # rows (frequency axis) wrap every Bb*W lanes.  These masks both implement
    # the conv zero-padding AND stop cross-sample leakage in the fused layout.
    lane = jax.lax.broadcasted_iota(jnp.int32, (1, L), 1)
    wcol = lane % W                       # time index within a sample
    row_top_ok = lane >= d * BbW          # h >= d          (valid for kh = 0 taps)
    row_bot_ok = lane < (H - d) * BbW     # h <  H - d      (valid for kh = 2 taps)

    # ---------------- F2: 1x1 conv (BN1 folded) + LeakyReLU -----------------
    # K = Cin is tiny -> VPU FMAs with sublane/lane broadcasts instead of MXU.
    if Cin <= 8:
        y = W1[:, 0:1] * x[0:1, :]
        for cin in range(1, Cin):
            y = y + W1[:, cin:cin + 1] * x[cin:cin + 1, :]
    else:
        y = jnp.dot(W1, x, preferred_element_type=jnp.float32)
    y = _leaky(y + b1)

    # ---------------- F2: 3x3 depthwise conv, stride=1, padding=dilation ----
    # Column-shifted variants (masked) are reused across the three row shifts;
    # this is valid because the row shifts are multiples of W, so the column
    # of a lane is invariant under them.  Row-wrap garbage is killed by the
    # row masks applied after the row shift.
    # TODO(synk): stride > 1 of DepthWiseConv is not implemented.
    def wdw(kh, kw):
        c0 = 6 + kh * 3 + kw
        return pvec[:, c0:c0 + 1]

    cv0 = jnp.where(wcol >= d, shifted(y, -d), 0.0)       # reads w - d
    cv2 = jnp.where(wcol < W - d, shifted(y, d), 0.0)     # reads w + d

    acc = y * wdw(1, 1) + cv0 * wdw(1, 0) + cv2 * wdw(1, 2)          # kh = 1
    top = y * wdw(0, 1) + cv0 * wdw(0, 0) + cv2 * wdw(0, 2)          # kh = 0 (row h - d)
    acc = acc + jnp.where(row_top_ok, shifted(top, -d * BbW), 0.0)
    bot = y * wdw(2, 1) + cv0 * wdw(2, 0) + cv2 * wdw(2, 2)          # kh = 2 (row h + d)
    acc = acc + jnp.where(row_bot_ok, shifted(bot, d * BbW), 0.0)

    # ---------------- F2: SubSpectralNorm (folded affine, b_dw folded in) ---
    # TODO(synk): verify SSN sub-band/channel ordering against the exact
    #             PyTorch SubSpectralNorm implementation (c*S+s vs s*C+c).
    x2 = acc * ssn_ref[0] + ssn_ref[1]                    # (C, L)

    # ---------------- F1: mean over frequency (H) ----------------------------
    # Cyclic log-tree reduction with stride Bb*W.  Since the stride has period
    # exactly H over the L lanes, every lane ends up holding the full sum over
    # h for its (sample, time) column -> the result is already broadcast over
    # H and the residual needs no explicit broadcast later.
    total = None
    consumed = 0
    A = x2
    k = 0
    m = H
    while m:
        if m & 1:
            part = shifted(A, consumed * BbW) if consumed else A
            total = part if total is None else total + part
            consumed += 1 << k
        m >>= 1
        if m:
            A = A + shifted(A, (1 << k) * BbW)
            k += 1
    xp = total * (1.0 / H)                                # (C, L), constant over h

    # ---------------- F1: (1,3) temporal depthwise conv, padding=1 ----------
    left = jnp.where(wcol >= 1, shifted(xp, -1), 0.0)     # reads w - 1
    right = jnp.where(wcol < W - 1, shifted(xp, 1), 0.0)  # reads w + 1
    z = xp * pvec[:, 4:5] + left * pvec[:, 3:4] + right * pvec[:, 5:6]
    # (temporal bias is folded into bp)

    # ---------------- F1: pointwise (BN2 folded) + SiLU + final 1x1 ---------
    z = jnp.dot(Wp, z, preferred_element_type=jnp.float32) + bp      # MXU, N = L >= 128
    z = z * jax.nn.sigmoid(z)
    x1 = jnp.dot(W3, z, preferred_element_type=jnp.float32) + b3     # (C, L)

    # ---------------- residual (x1 already broadcast over H) + LeakyReLU ----
    o_ref[0] = _leaky(x2 + x1)


# ---------------------------------------------------------------------------
# Host-side folding + packing of parameters for the kernel.
# ---------------------------------------------------------------------------
def _pack_params(p, H, rep):
    Cin, C = p["w1"].shape
    s1, t1 = p["bn1_s"][0], p["bn1_b"][0]
    s2, t2 = p["bn2_s"][0], p["bn2_b"][0]
    b1, bp, b3 = p["b1"][0], p["b_pw"][0], p["b_f1"][0]
    bdw, btdw = p["b_dw"][0], p["b_tdw"][0]

    # Fold BN1 into the first 1x1 conv.
    W1 = (p["w1"] * s1[None, :]).T               # (C, Cin)
    b1f = b1 * s1 + t1                           # (C,)

    # Fold BN2 and the temporal-depthwise bias into the pointwise conv.
    Wp_in = p["w_pw"] * s2[None, :]              # (C_in=C, C_out=C), BN2 scaled
    Wp = Wp_in.T                                 # (C_out, C_in)
    bpf = btdw @ Wp_in + bp * s2 + t2            # (C,)

    W3 = p["w_f1"].T                             # (C, C)

    # Pack per-channel vectors: [b1f, bpf, b3, wt(3), wdw(9)] -> (C, 15)
    wt = p["w_tdw"]                              # (3, C)
    wdw = p["w_dw"].reshape(9, C)                # (9, C), tap order kh*3+kw
    pvec = jnp.concatenate(
        [b1f[:, None], bpf[:, None], b3[:, None], wt.T, wdw.T], axis=1)

    # Pack the three pointwise matrices -> (C, Cin + 2C)
    pmat = jnp.concatenate([W1, Wp, W3], axis=1)

    # SubSpectralNorm: fold depthwise bias into the shift, expand to (C, H*rep)
    # where rep = Bb*W (value depends on (c, h) only).
    ssn_s = p["ssn_s"]                           # (H, C)
    ssn_b = bdw[None, :] * ssn_s + p["ssn_b"]    # (H, C)

    def expand(a_hc):                            # (H, C) -> (C, H*rep)
        return jnp.repeat(a_hc.T[:, :, None], rep, axis=2).reshape(C, H * rep)

    ssn = jnp.stack([expand(ssn_s), expand(ssn_b)], axis=0)   # (2, C, H*rep)
    return (pvec.astype(jnp.float32), pmat.astype(jnp.float32),
            ssn.astype(jnp.float32))


# ---------------------------------------------------------------------------
# Wrapper: NCHW in, NCHW out.  Folds Bb samples per grid step into the lane
# axis (lane = h*(Bb*W) + b*W + w) via cheap host-side transposes.
# ---------------------------------------------------------------------------
def bc_res_block(x_nchw, params, *, stride=1, dilation=1, block_batch=None):
    if stride != 1:
        # TODO(synk): strided frequency-depthwise conv not supported in this kernel.
        raise NotImplementedError("stride != 1 not supported")

    N, Cin, H, W = x_nchw.shape
    C = params["w1"].shape[1]
    HW = H * W

    # Batch block size: fold samples into lanes for density, but keep >= 2 grid
    # steps when possible so both v7x TensorCores get work.
    if block_batch is None:
        cap = max(1, 4096 // HW)                 # keep per-step tensors small
        block_batch = max(1, min(N // 2, cap)) if N >= 2 else 1
    Bb = int(block_batch)
    G = -(-N // Bb)
    Np = G * Bb
    L = H * Bb * W

    x = x_nchw.astype(jnp.float32)
    if Np != N:
        x = jnp.concatenate(
            [x, jnp.zeros((Np - N, Cin, H, W), jnp.float32)], axis=0)

    # Fused lane layout per grid step: lane = h*(Bb*W) + b*W + w.
    xf = (x.reshape(G, Bb, Cin, H, W)
           .transpose(0, 2, 3, 1, 4)
           .reshape(G, Cin, L))

    pvec, pmat, ssn = _pack_params(params, H, Bb * W)

    use_xlu_roll = _probe_pltpu_roll()
    kernel = functools.partial(bc_res_block_kernel, H=H, W=W, Bb=Bb,
                               dilation=dilation, use_xlu_roll=use_xlu_roll)

    out = pl.pallas_call(
        kernel,
        out_shape=jax.ShapeDtypeStruct((G, C, L), jnp.float32),
        grid=(G,),
        in_specs=[
            pl.BlockSpec((1, Cin, L), lambda g: (g, 0, 0)),
            pl.BlockSpec(pvec.shape, lambda g: (0, 0)),
            pl.BlockSpec(pmat.shape, lambda g: (0, 0)),
            pl.BlockSpec(ssn.shape, lambda g: (0, 0, 0)),
        ],
        out_specs=pl.BlockSpec((1, C, L), lambda g: (g, 0, 0)),
        compiler_params=pltpu.CompilerParams(dimension_semantics=("parallel",)),
    )(xf, pvec, pmat, ssn)

    out = (out.reshape(G, C, H, Bb, W)
              .transpose(0, 3, 1, 2, 4)
              .reshape(Np, C, H, W))
    return out[:N]


# ---------------------------------------------------------------------------
# Deterministic parameter init (BN / SSN already as eval-mode scale & shift).
# ---------------------------------------------------------------------------
def init_params(key, Cin, C, H, S, eps=1e-5):
    ks = list(jax.random.split(key, 24))

    def nrm(k, shape, s=0.2):
        return (s * jax.random.normal(k, shape)).astype(jnp.float32)

    def bn_fold(kg, kb, km, kv, n):
        gamma = 1.0 + nrm(kg, (n,), 0.1)
        beta = nrm(kb, (n,), 0.1)
        mean = nrm(km, (n,), 0.1)
        var = 1.0 + 0.1 * jnp.abs(jax.random.normal(kv, (n,)))
        scale = gamma / jnp.sqrt(var + eps)
        shift = beta - mean * scale
        return scale.astype(jnp.float32), shift.astype(jnp.float32)

    w1 = nrm(ks[0], (Cin, C), 0.3)
    b1 = nrm(ks[1], (1, C), 0.1)
    bn1_s, bn1_b = bn_fold(ks[2], ks[3], ks[4], ks[5], C)
    w_dw = nrm(ks[6], (3, 3, C), 0.3)
    b_dw = nrm(ks[7], (1, C), 0.1)
    ssn_s_flat, ssn_b_flat = bn_fold(ks[8], ks[9], ks[10], ks[11], C * S)

    def expand_rows(v):     # (C*S,) -> (H, C); sub-band s covers rows [s*H/S, (s+1)*H/S)
        return jnp.repeat(v.reshape(C, S).T, H // S, axis=0)

    ssn_s, ssn_b = expand_rows(ssn_s_flat), expand_rows(ssn_b_flat)
    w_tdw = nrm(ks[12], (3, C), 0.3)
    b_tdw = nrm(ks[13], (1, C), 0.1)
    w_pw = nrm(ks[14], (C, C), 0.3)
    b_pw = nrm(ks[15], (1, C), 0.1)
    bn2_s, bn2_b = bn_fold(ks[16], ks[17], ks[18], ks[19], C)
    w_f1 = nrm(ks[20], (C, C), 0.3)
    b_f1 = nrm(ks[21], (1, C), 0.1)

    return dict(w1=w1, b1=b1, bn1_s=bn1_s.reshape(1, C), bn1_b=bn1_b.reshape(1, C),
                w_dw=w_dw, b_dw=b_dw, ssn_s=ssn_s, ssn_b=ssn_b,
                w_tdw=w_tdw, b_tdw=b_tdw, w_pw=w_pw, b_pw=b_pw,
                bn2_s=bn2_s.reshape(1, C), bn2_b=bn2_b.reshape(1, C),
                w_f1=w_f1, b_f1=b_f1)


# ---------------------------------------------------------------------------
# Pure-JAX reference (same math, HIGHEST precision) for validation.
# ---------------------------------------------------------------------------
def reference(x_nchw, p, dilation):
    hp = jax.lax.Precision.HIGHEST
    x = jnp.transpose(x_nchw, (0, 2, 3, 1)).astype(jnp.float32)     # N,H,W,Cin
    N, H, W, Cin = x.shape
    C = p["w1"].shape[1]

    y = jnp.einsum("nhwi,io->nhwo", x, p["w1"], precision=hp) + p["b1"][0]
    y = y * p["bn1_s"][0] + p["bn1_b"][0]
    y = jnp.where(y > 0, y, 0.01 * y)

    pad = dilation
    yp = jnp.pad(y, ((0, 0), (pad, pad), (pad, pad), (0, 0)))
    acc = jnp.zeros_like(y)
    for kh in range(3):
        for kw in range(3):
            acc = acc + yp[:, kh * dilation:kh * dilation + H,
                           kw * dilation:kw * dilation + W, :] * p["w_dw"][kh, kw]
    y = acc + p["b_dw"][0]
    x2 = y * p["ssn_s"][None, :, None, :] + p["ssn_b"][None, :, None, :]

    xp = jnp.mean(x2, axis=1)                                       # (N, W, C)
    xpp = jnp.pad(xp, ((0, 0), (1, 1), (0, 0)))
    acc1 = jnp.zeros_like(xp)
    for kw in range(3):
        acc1 = acc1 + xpp[:, kw:kw + W, :] * p["w_tdw"][kw]
    z = acc1 + p["b_tdw"][0]
    z = jnp.einsum("nwc,cd->nwd", z, p["w_pw"], precision=hp) + p["b_pw"][0]
    z = z * p["bn2_s"][0] + p["bn2_b"][0]
    z = z * jax.nn.sigmoid(z)
    x1 = jnp.einsum("nwc,cd->nwd", z, p["w_f1"], precision=hp) + p["b_f1"][0]

    out = x2 + x1[:, None, :, :]
    out = jnp.where(out > 0, out, 0.01 * out)
    return jnp.transpose(out, (0, 3, 1, 2))


if __name__ == "__main__":
    key = jax.random.PRNGKey(0)
    kx, kp = jax.random.split(key)

    # NCHW input (N, Cin, freq=H, time=W); H divisible by S=5 (SubSpectralNorm).
    # N=4 -> 2 "parallel" grid steps of 2 samples each (640 lanes = 5 vregs).
    N, Cin, Cout, H, W, S = 4, 4, 8, 20, 16, 5
    x = jax.random.normal(kx, (N, Cin, H, W), jnp.float32)
    params = init_params(kp, Cin, Cout, H, S)

    out = bc_res_block(x, params, stride=1, dilation=1)
    out = jax.block_until_ready(out)

    assert out.shape == (N, Cout, H, W)
    ref = reference(x, params, 1)
    err = float(jnp.max(jnp.abs(out - ref)))
    assert err < 5e-3, f"max abs err {err}"
    print("KERNEL_OK")
</pallas_src>

<mosaic_0001>
module attributes {stable_mosaic.version = 11 : i64} {
  func.func @k(%arg0: memref<8x256xf32, #tpu.memory_space<vmem>>, %arg1: memref<8x256xf32, #tpu.memory_space<vmem>>) attributes {dimension_semantics = [], scalar_prefetch = 0 : i64, scratch_operands = 0 : i64, tpu.core_type = #tpu.core_type<tc>} {
    %c0 = arith.constant 0 : index
    %c0_0 = arith.constant 0 : index
    %0 = vector.load %arg0[%c0, %c0_0] : memref<8x256xf32, #tpu.memory_space<vmem>>, vector<8x256xf32>
    %c3_i32 = arith.constant 3 : i32
    %1 = tpu.dynamic_rotate %0 by %c3_i32 dim 1 : vector<8x256xf32>, i32 -> vector<8x256xf32>
    %c0_1 = arith.constant 0 : index
    %c0_2 = arith.constant 0 : index
    %2 = vector.load %arg1[%c0_1, %c0_2] : memref<8x256xf32, #tpu.memory_space<vmem>>, vector<8x256xf32>
    tpu.vector_store %arg1[%c0_1, %c0_2], %1 {strides = array<i32>} : memref<8x256xf32, #tpu.memory_space<vmem>>, vector<8x256xf32>,
    return
  }
}

module attributes {stable_mosaic.version = 11 : i64} {
  func.func @bc_res_block_kernel(%arg0: i32, %arg1: memref<1x4x640xf32, #tpu.memory_space<vmem>>, %arg2: memref<8x15xf32, #tpu.memory_space<vmem>>, %arg3: memref<8x20xf32, #tpu.memory_space<vmem>>, %arg4: memref<2x8x640xf32, #tpu.memory_space<vmem>>, %arg5: memref<1x8x640xf32, #tpu.memory_space<vmem>>) attributes {dimension_semantics = [#tpu.dimension_semantics<parallel>], iteration_bounds = array<i64: 2>, scalar_prefetch = 0 : i64, scratch_operands = 0 : i64, tpu.core_type = #tpu.core_type<tc>, window_params = [{transform_indices = @transform_0, window_bounds = array<i64: 1, 4, 640>}, {pipeline_mode = #tpu.pipeline_mode<synchronous>, transform_indices = @transform_1, window_bounds = array<i64: 8, 15>}, {pipeline_mode = #tpu.pipeline_mode<synchronous>, transform_indices = @transform_2, window_bounds = array<i64: 8, 20>}, {pipeline_mode = #tpu.pipeline_mode<synchronous>, transform_indices = @transform_3, window_bounds = array<i64: 2, 8, 640>}, {transform_indices = @transform_4, window_bounds = array<i64: 1, 8, 640>}]} {
    %c0 = arith.constant 0 : index
    %c0_0 = arith.constant 0 : index
    %c0_1 = arith.constant 0 : index
    %0 = vector.load %arg1[%c0, %c0_0, %c0_1] : memref<1x4x640xf32, #tpu.memory_space<vmem>>, vector<1x4x640xf32>
    %1 = vector.shape_cast %0 : vector<1x4x640xf32> to vector<4x640xf32>
    %c0_2 = arith.constant 0 : index
    %c0_3 = arith.constant 0 : index
    %2 = vector.load %arg2[%c0_2, %c0_3] : memref<8x15xf32, #tpu.memory_space<vmem>>, vector<8x15xf32>
    %c0_4 = arith.constant 0 : index
    %c0_5 = arith.constant 0 : index
    %3 = vector.load %arg3[%c0_4, %c0_5] : memref<8x20xf32, #tpu.memory_space<vmem>>, vector<8x20xf32>
    %4 = vector.extract_strided_slice %3 {offsets = [0, 0], sizes = [8, 4], strides = [1, 1]} : vector<8x20xf32> to vector<8x4xf32>
    %5 = vector.extract_strided_slice %3 {offsets = [0, 4], sizes = [8, 8], strides = [1, 1]} : vector<8x20xf32> to vector<8x8xf32>
    %6 = vector.extract_strided_slice %3 {offsets = [0, 12], sizes = [8, 8], strides = [1, 1]} : vector<8x20xf32> to vector<8x8xf32>
    %7 = vector.extract_strided_slice %2 {offsets = [0, 0], sizes = [8, 1], strides = [1, 1]} : vector<8x15xf32> to vector<8x1xf32>
    %8 = vector.extract_strided_slice %2 {offsets = [0, 1], sizes = [8, 1], strides = [1, 1]} : vector<8x15xf32> to vector<8x1xf32>
    %9 = vector.extract_strided_slice %2 {offsets = [0, 2], sizes = [8, 1], strides = [1, 1]} : vector<8x15xf32> to vector<8x1xf32>
    %10 = tpu.iota {dimensions = array<i32: 1>} : vector<1x640xi32>
    %c16_i32 = arith.constant 16 : i32
    %c0_i32 = arith.constant 0 : i32
    %11 = arith.cmpi eq, %c16_i32, %c0_i32 : i32
    %c1_i32 = arith.constant 1 : i32
    %12 = arith.select %11, %c1_i32, %c16_i32 : i32
    %13 = vector.broadcast %12 : i32 to vector<1x640xi32>
    %14 = arith.remsi %10, %13 : vector<1x640xi32>
    %c0_i32_6 = arith.constant 0 : i32
    %15 = vector.broadcast %c0_i32_6 : i32 to vector<1x640xi32>
    %16 = arith.cmpi ne, %14, %15 : vector<1x640xi32>
    %c0_i32_7 = arith.constant 0 : i32
    %17 = vector.broadcast %c0_i32_7 : i32 to vector<1x640xi32>
    %18 = arith.cmpi slt, %14, %17 : vector<1x640xi32>
    %c0_i32_8 = arith.constant 0 : i32
    %19 = arith.cmpi slt, %12, %c0_i32_8 : i32
    %20 = vector.broadcast %19 : i1 to vector<1x640xi1>
    %21 = vector.broadcast %20 : vector<1x640xi1> to vector<1x640xi1>
    %22 = arith.xori %18, %21 : vector<1x640xi1>
    %23 = arith.andi %22, %16 : vector<1x640xi1>
    %24 = vector.broadcast %12 : i32 to vector<1x640xi32>
    %25 = arith.addi %14, %24 : vector<1x640xi32>
    %26 = arith.select %23, %25, %14 : vector<1x640xi1>, vector<1x640xi32>
    %c32_i32 = arith.constant 32 : i32
    %27 = vector.broadcast %c32_i32 : i32 to vector<1x640xi32>
    %28 = arith.cmpi sge, %10, %27 : vector<1x640xi32>
    %c608_i32 = arith.constant 608 : i32
    %29 = vector.broadcast %c608_i32 : i32 to vector<1x640xi32>
    %30 = arith.cmpi slt, %10, %29 : vector<1x640xi32>
    %31 = vector.extract_strided_slice %4 {offsets = [0, 0], sizes = [8, 1], strides = [1, 1]} : vector<8x4xf32> to vector<8x1xf32>
    %32 = vector.extract_strided_slice %1 {offsets = [0, 0], sizes = [1, 640], strides = [1, 1]} : vector<4x640xf32> to vector<1x640xf32>
    %33 = vector.broadcast %31 : vector<8x1xf32> to vector<8x640xf32>
    %34 = vector.broadcast %32 : vector<1x640xf32> to vector<8x640xf32>
    %35 = arith.mulf %33, %34 : vector<8x640xf32>
    %36 = vector.extract_strided_slice %4 {offsets = [0, 1], sizes = [8, 1], strides = [1, 1]} : vector<8x4xf32> to vector<8x1xf32>
    %37 = vector.extract_strided_slice %1 {offsets = [1, 0], sizes = [1, 640], strides = [1, 1]} : vector<4x640xf32> to vector<1x640xf32>
    %38 = vector.broadcast %36 : vector<8x1xf32> to vector<8x640xf32>
    %39 = vector.broadcast %37 : vector<1x640xf32> to vector<8x640xf32>
    %40 = arith.mulf %38, %39 : vector<8x640xf32>
    %41 = arith.addf %35, %40 : vector<8x640xf32>
    %42 = vector.extract_strided_slice %4 {offsets = [0, 2], sizes = [8, 1], strides = [1, 1]} : vector<8x4xf32> to vector<8x1xf32>
    %43 = vector.extract_strided_slice %1 {offsets = [2, 0], sizes = [1, 640], strides = [1, 1]} : vector<4x640xf32> to vector<1x640xf32>
    %44 = vector.broadcast %42 : vector<8x1xf32> to vector<8x640xf32>
    %45 = vector.broadcast %43 : vector<1x640xf32> to vector<8x640xf32>
    %46 = arith.mulf %44, %45 : vector<8x640xf32>
    %47 = arith.addf %41, %46 : vector<8x640xf32>
    %48 = vector.extract_strided_slice %4 {offsets = [0, 3], sizes = [8, 1], strides = [1, 1]} : vector<8x4xf32> to vector<8x1xf32>
    %49 = vector.extract_strided_slice %1 {offsets = [3, 0], sizes = [1, 640], strides = [1, 1]} : vector<4x640xf32> to vector<1x640xf32>
    %50 = vector.broadcast %48 : vector<8x1xf32> to vector<8x640xf32>
    %51 = vector.broadcast %49 : vector<1x640xf32> to vector<8x640xf32>
    %52 = arith.mulf %50, %51 : vector<8x640xf32>
    %53 = arith.addf %47, %52 : vector<8x640xf32>
    %54 = vector.broadcast %7 : vector<8x1xf32> to vector<8x640xf32>
    %55 = arith.addf %53, %54 : vector<8x640xf32>
    %cst = arith.constant 0.000000e+00 : f32
    %56 = vector.broadcast %cst : f32 to vector<8x640xf32>
    %57 = arith.cmpf ogt, %55, %56 : vector<8x640xf32>
    %cst_9 = arith.constant 0.00999999977 : f32
    %58 = vector.broadcast %cst_9 : f32 to vector<8x640xf32>
    %59 = arith.mulf %58, %55 : vector<8x640xf32>
    %60 = arith.select %57, %55, %59 : vector<8x640xi1>, vector<8x640xf32>
    %c1_i32_10 = arith.constant 1 : i32
    %61 = vector.broadcast %c1_i32_10 : i32 to vector<1x640xi32>
    %62 = arith.cmpi sge, %26, %61 : vector<1x640xi32>
    %63 = vector.extract_strided_slice %60 {offsets = [0, 639], sizes = [8, 1], strides = [1, 1]} : vector<8x640xf32> to vector<8x1xf32>
    %64 = vector.extract_strided_slice %60 {offsets = [0, 0], sizes = [8, 639], strides = [1, 1]} : vector<8x640xf32> to vector<8x639xf32>
    %65 = tpu.concatenate %63, %64 in 1 : vector<8x1xf32>, vector<8x639xf32> -> vector<8x640xf32>
    %cst_11 = arith.constant 0.000000e+00 : f32
    %66 = vector.shape_cast %62 : vector<1x640xi1> to vector<1x640xi1>
    %67 = vector.broadcast %66 : vector<1x640xi1> to vector<8x640xi1>
    %68 = vector.broadcast %cst_11 : f32 to vector<8x640xf32>
    %69 = arith.select %67, %65, %68 : vector<8x640xi1>, vector<8x640xf32>
    %c15_i32 = arith.constant 15 : i32
    %70 = vector.broadcast %c15_i32 : i32 to vector<1x640xi32>
    %71 = arith.cmpi slt, %26, %70 : vector<1x640xi32>
    %72 = vector.extract_strided_slice %60 {offsets = [0, 1], sizes = [8, 639], strides = [1, 1]} : vector<8x640xf32> to vector<8x639xf32>
    %73 = vector.extract_strided_slice %60 {offsets = [0, 0], sizes = [8, 1], strides = [1, 1]} : vector<8x640xf32> to vector<8x1xf32>
    %74 = tpu.concatenate %72, %73 in 1 : vector<8x639xf32>, vector<8x1xf32> -> vector<8x640xf32>
    %cst_12 = arith.constant 0.000000e+00 : f32
    %75 = vector.shape_cast %71 : vector<1x640xi1> to vector<1x640xi1>
    %76 = vector.broadcast %75 : vector<1x640xi1> to vector<8x640xi1>
    %77 = vector.broadcast %cst_12 : f32 to vector<8x640xf32>
    %78 = arith.select %76, %74, %77 : vector<8x640xi1>, vector<8x640xf32>
    %79 = vector.extract_strided_slice %2 {offsets = [0, 10], sizes = [8, 1], strides = [1, 1]} : vector<8x15xf32> to vector<8x1xf32>
    %80 = vector.broadcast %79 : vector<8x1xf32> to vector<8x640xf32>
    %81 = arith.mulf %60, %80 : vector<8x640xf32>
    %82 = vector.extract_strided_slice %2 {offsets = [0, 9], sizes = [8, 1], strides = [1, 1]} : vector<8x15xf32> to vector<8x1xf32>
    %83 = vector.broadcast %82 : vector<8x1xf32> to vector<8x640xf32>
    %84 = arith.mulf %69, %83 : vector<8x640xf32>
    %85 = arith.addf %81, %84 : vector<8x640xf32>
    %86 = vector.extract_strided_slice %2 {offsets = [0, 11], sizes = [8, 1], strides = [1, 1]} : vector<8x15xf32> to vector<8x1xf32>
    %87 = vector.broadcast %86 : vector<8x1xf32> to vector<8x640xf32>
    %88 = arith.mulf %78, %87 : vector<8x640xf32>
    %89 = arith.addf %85, %88 : vector<8x640xf32>
    %90 = vector.extract_strided_slice %2 {offsets = [0, 7], sizes = [8, 1], strides = [1, 1]} : vector<8x15xf32> to vector<8x1xf32>
    %91 = vector.broadcast %90 : vector<8x1xf32> to vector<8x640xf32>
    %92 = arith.mulf %60, %91 : vector<8x640xf32>
    %93 = vector.extract_strided_slice %2 {offsets = [0, 6], sizes = [8, 1], strides = [1, 1]} : vector<8x15xf32> to vector<8x1xf32>
    %94 = vector.broadcast %93 : vector<8x1xf32> to vector<8x640xf32>
    %95 = arith.mulf %69, %94 : vector<8x640xf32>
    %96 = arith.addf %92, %95 : vector<8x640xf32>
    %97 = vector.extract_strided_slice %2 {offsets = [0, 8], sizes = [8, 1], strides = [1, 1]} : vector<8x15xf32> to vector<8x1xf32>
    %98 = vector.broadcast %97 : vector<8x1xf32> to vector<8x640xf32>
    %99 = arith.mulf %78, %98 : vector<8x640xf32>
    %100 = arith.addf %96, %99 : vector<8x640xf32>
    %101 = vector.extract_strided_slice %100 {offsets = [0, 608], sizes = [8, 32], strides = [1, 1]} : vector<8x640xf32> to vector<8x32xf32>
    %102 = vector.extract_strided_slice %100 {offsets = [0, 0], sizes = [8, 608], strides = [1, 1]} : vector<8x640xf32> to vector<8x608xf32>
    %103 = tpu.concatenate %101, %102 in 1 : vector<8x32xf32>, vector<8x608xf32> -> vector<8x640xf32>
    %cst_13 = arith.constant 0.000000e+00 : f32
    %104 = vector.shape_cast %28 : vector<1x640xi1> to vector<1x640xi1>
    %105 = vector.broadcast %104 : vector<1x640xi1> to vector<8x640xi1>
    %106 = vector.broadcast %cst_13 : f32 to vector<8x640xf32>
    %107 = arith.select %105, %103, %106 : vector<8x640xi1>, vector<8x640xf32>
    %108 = arith.addf %89, %107 : vector<8x640xf32>
    %109 = vector.extract_strided_slice %2 {offsets = [0, 13], sizes = [8, 1], strides = [1, 1]} : vector<8x15xf32> to vector<8x1xf32>
    %110 = vector.broadcast %109 : vector<8x1xf32> to vector<8x640xf32>
    %111 = arith.mulf %60, %110 : vector<8x640xf32>
    %112 = vector.extract_strided_slice %2 {offsets = [0, 12], sizes = [8, 1], strides = [1, 1]} : vector<8x15xf32> to vector<8x1xf32>
    %113 = vector.broadcast %112 : vector<8x1xf32> to vector<8x640xf32>
    %114 = arith.mulf %69, %113 : vector<8x640xf32>
    %115 = arith.addf %111, %114 : vector<8x640xf32>
    %116 = vector.extract_strided_slice %2 {offsets = [0, 14], sizes = [8, 1], strides = [1, 1]} : vector<8x15xf32> to vector<8x1xf32>
    %117 = vector.broadcast %116 : vector<8x1xf32> to vector<8x640xf32>
    %118 = arith.mulf %78, %117 : vector<8x640xf32>
    %119 = arith.addf %115, %118 : vector<8x640xf32>
    %120 = vector.extract_strided_slice %119 {offsets = [0, 32], sizes = [8, 608], strides = [1, 1]} : vector<8x640xf32> to vector<8x608xf32>
    %121 = vector.extract_strided_slice %119 {offsets = [0, 0], sizes = [8, 32], strides = [1, 1]} : vector<8x640xf32> to vector<8x32xf32>
    %122 = tpu.concatenate %120, %121 in 1 : vector<8x608xf32>, vector<8x32xf32> -> vector<8x640xf32>
    %cst_14 = arith.constant 0.000000e+00 : f32
    %123 = vector.shape_cast %30 : vector<1x640xi1> to vector<1x640xi1>
    %124 = vector.broadcast %123 : vector<1x640xi1> to vector<8x640xi1>
    %125 = vector.broadcast %cst_14 : f32 to vector<8x640xf32>
    %126 = arith.select %124, %122, %125 : vector<8x640xi1>, vector<8x640xf32>
    %127 = arith.addf %108, %126 : vector<8x640xf32>
    %c0_15 = arith.constant 0 : index
    %c0_16 = arith.constant 0 : index
    %c0_17 = arith.constant 0 : index
    %128 = vector.load %arg4[%c0_15, %c0_16, %c0_17] : memref<2x8x640xf32, #tpu.memory_space<vmem>>, vector<1x8x640xf32>
    %129 = vector.shape_cast %128 : vector<1x8x640xf32> to vector<8x640xf32>
    %130 = arith.mulf %127, %129 : vector<8x640xf32>
    %c1 = arith.constant 1 : index
    %c0_18 = arith.constant 0 : index
    %c0_19 = arith.constant 0 : index
    %131 = vector.load %arg4[%c1, %c0_18, %c0_19] : memref<2x8x640xf32, #tpu.memory_space<vmem>>, vector<1x8x640xf32>
    %132 = vector.shape_cast %131 : vector<1x8x640xf32> to vector<8x640xf32>
    %133 = arith.addf %130, %132 : vector<8x640xf32>
    %134 = vector.extract_strided_slice %133 {offsets = [0, 32], sizes = [8, 608], strides = [1, 1]} : vector<8x640xf32> to vector<8x608xf32>
    %135 = vector.extract_strided_slice %133 {offsets = [0, 0], sizes = [8, 32], strides = [1, 1]} : vector<8x640xf32> to vector<8x32xf32>
    %136 = tpu.concatenate %134, %135 in 1 : vector<8x608xf32>, vector<8x32xf32> -> vector<8x640xf32>
    %137 = arith.addf %133, %136 : vector<8x640xf32>
    %138 = vector.extract_strided_slice %137 {offsets = [0, 64], sizes = [8, 576], strides = [1, 1]} : vector<8x640xf32> to vector<8x576xf32>
    %139 = vector.extract_strided_slice %137 {offsets = [0, 0], sizes = [8, 64], strides = [1, 1]} : vector<8x640xf32> to vector<8x64xf32>
    %140 = tpu.concatenate %138, %139 in 1 : vector<8x576xf32>, vector<8x64xf32> -> vector<8x640xf32>
    %141 = arith.addf %137, %140 : vector<8x640xf32>
    %142 = vector.extract_strided_slice %141 {offsets = [0, 128], sizes = [8, 512], strides = [1, 1]} : vector<8x640xf32> to vector<8x512xf32>
    %143 = vector.extract_strided_slice %141 {offsets = [0, 0], sizes = [8, 128], strides = [1, 1]} : vector<8x640xf32> to vector<8x128xf32>
    %144 = tpu.concatenate %142, %143 in 1 : vector<8x512xf32>, vector<8x128xf32> -> vector<8x640xf32>
    %145 = arith.addf %141, %144 : vector<8x640xf32>
    %146 = vector.extract_strided_slice %145 {offsets = [0, 256], sizes = [8, 384], strides = [1, 1]} : vector<8x640xf32> to vector<8x384xf32>
    %147 = vector.extract_strided_slice %145 {offsets = [0, 0], sizes = [8, 256], strides = [1, 1]} : vector<8x640xf32> to vector<8x256xf32>
    %148 = tpu.concatenate %146, %147 in 1 : vector<8x384xf32>, vector<8x256xf32> -> vector<8x640xf32>
    %149 = arith.addf %145, %148 : vector<8x640xf32>
    %150 = vector.extract_strided_slice %149 {offsets = [0, 128], sizes = [8, 512], strides = [1, 1]} : vector<8x640xf32> to vector<8x512xf32>
    %151 = vector.extract_strided_slice %149 {offsets = [0, 0], sizes = [8, 128], strides = [1, 1]} : vector<8x640xf32> to vector<8x128xf32>
    %152 = tpu.concatenate %150, %151 in 1 : vector<8x512xf32>, vector<8x128xf32> -> vector<8x640xf32>
    %153 = arith.addf %141, %152 : vector<8x640xf32>
    %cst_20 = arith.constant 5.000000e-02 : f32
    %154 = vector.broadcast %cst_20 : f32 to vector<8x640xf32>
    %155 = arith.mulf %153, %154 : vector<8x640xf32>
    %c1_i32_21 = arith.constant 1 : i32
    %156 = vector.broadcast %c1_i32_21 : i32 to vector<1x640xi32>
    %157 = arith.cmpi sge, %26, %156 : vector<1x640xi32>
    %158 = vector.extract_strided_slice %155 {offsets = [0, 639], sizes = [8, 1], strides = [1, 1]} : vector<8x640xf32> to vector<8x1xf32>
    %159 = vector.extract_strided_slice %155 {offsets = [0, 0], sizes = [8, 639], strides = [1, 1]} : vector<8x640xf32> to vector<8x639xf32>
    %160 = tpu.concatenate %158, %159 in 1 : vector<8x1xf32>, vector<8x639xf32> -> vector<8x640xf32>
    %cst_22 = arith.constant 0.000000e+00 : f32
    %161 = vector.shape_cast %157 : vector<1x640xi1> to vector<1x640xi1>
    %162 = vector.broadcast %161 : vector<1x640xi1> to vector<8x640xi1>
    %163 = vector.broadcast %cst_22 : f32 to vector<8x640xf32>
    %164 = arith.select %162, %160, %163 : vector<8x640xi1>, vector<8x640xf32>
    %c15_i32_23 = arith.constant 15 : i32
    %165 = vector.broadcast %c15_i32_23 : i32 to vector<1x640xi32>
    %166 = arith.cmpi slt, %26, %165 : vector<1x640xi32>
    %167 = vector.extract_strided_slice %155 {offsets = [0, 1], sizes = [8, 639], strides = [1, 1]} : vector<8x640xf32> to vector<8x639xf32>
    %168 = vector.extract_strided_slice %155 {offsets = [0, 0], sizes = [8, 1], strides = [1, 1]} : vector<8x640xf32> to vector<8x1xf32>
    %169 = tpu.concatenate %167, %168 in 1 : vector<8x639xf32>, vector<8x1xf32> -> vector<8x640xf32>
    %cst_24 = arith.constant 0.000000e+00 : f32
    %170 = vector.shape_cast %166 : vector<1x640xi1> to vector<1x640xi1>
    %171 = vector.broadcast %170 : vector<1x640xi1> to vector<8x640xi1>
    %172 = vector.broadcast %cst_24 : f32 to vector<8x640xf32>
    %173 = arith.select %171, %169, %172 : vector<8x640xi1>, vector<8x640xf32>
    %174 = vector.extract_strided_slice %2 {offsets = [0, 4], sizes = [8, 1], strides = [1, 1]} : vector<8x15xf32> to vector<8x1xf32>
    %175 = vector.broadcast %174 : vector<8x1xf32> to vector<8x640xf32>
    %176 = arith.mulf %155, %175 : vector<8x640xf32>
    %177 = vector.extract_strided_slice %2 {offsets = [0, 3], sizes = [8, 1], strides = [1, 1]} : vector<8x15xf32> to vector<8x1xf32>
    %178 = vector.broadcast %177 : vector<8x1xf32> to vector<8x640xf32>
    %179 = arith.mulf %164, %178 : vector<8x640xf32>
    %180 = arith.addf %176, %179 : vector<8x640xf32>
    %181 = vector.extract_strided_slice %2 {offsets = [0, 5], sizes = [8, 1], strides = [1, 1]} : vector<8x15xf32> to vector<8x1xf32>
    %182 = vector.broadcast %181 : vector<8x1xf32> to vector<8x640xf32>
    %183 = arith.mulf %173, %182 : vector<8x640xf32>
    %184 = arith.addf %180, %183 : vector<8x640xf32>
    %cst_25 = arith.constant dense<0.000000e+00> : vector<8x640xf32>
    %185 = tpu.matmul %5, %184, %cst_25 {dimension_numbers = #tpu.dot_dimension_numbers<[1], [0], [0], [1], [0, 0, 1, 1], [], []>} : vector<8x8xf32>, vector<8x640xf32>, vector<8x640xf32> -> vector<8x640xf32>
    %186 = vector.broadcast %8 : vector<8x1xf32> to vector<8x640xf32>
    %187 = arith.addf %185, %186 : vector<8x640xf32>
    %188 = arith.negf %187 : vector<8x640xf32>
    %189 = math.exp %188 : vector<8x640xf32>
    %cst_26 = arith.constant 1.000000e+00 : f32
    %190 = vector.broadcast %cst_26 : f32 to vector<8x640xf32>
    %191 = arith.addf %190, %189 : vector<8x640xf32>
    %192 = arith.divf %190, %191 : vector<8x640xf32>
    %193 = arith.mulf %187, %192 : vector<8x640xf32>
    %cst_27 = arith.constant dense<0.000000e+00> : vector<8x640xf32>
    %194 = tpu.matmul %6, %193, %cst_27 {dimension_numbers = #tpu.dot_dimension_numbers<[1], [0], [0], [1], [0, 0, 1, 1], [], []>} : vector<8x8xf32>, vector<8x640xf32>, vector<8x640xf32> -> vector<8x640xf32>
    %195 = vector.broadcast %9 : vector<8x1xf32> to vector<8x640xf32>
    %196 = arith.addf %194, %195 : vector<8x640xf32>
    %197 = arith.addf %133, %196 : vector<8x640xf32>
    %cst_28 = arith.constant 0.000000e+00 : f32
    %198 = vector.broadcast %cst_28 : f32 to vector<8x640xf32>
    %199 = arith.cmpf ogt, %197, %198 : vector<8x640xf32>
    %cst_29 = arith.constant 0.00999999977 : f32
    %200 = vector.broadcast %cst_29 : f32 to vector<8x640xf32>
    %201 = arith.mulf %200, %197 : vector<8x640xf32>
    %202 = arith.select %199, %197, %201 : vector<8x640xi1>, vector<8x640xf32>
    %c0_30 = arith.constant 0 : index
    %c0_31 = arith.constant 0 : index
    %c0_32 = arith.constant 0 : index
    %203 = vector.load %arg5[%c0_30, %c0_31, %c0_32] : memref<1x8x640xf32, #tpu.memory_space<vmem>>, vector<1x8x640xf32>
    %204 = vector.shape_cast %203 : vector<1x8x640xf32> to vector<8x640xf32>
    %205 = vector.shape_cast %202 : vector<8x640xf32> to vector<1x8x640xf32>
    tpu.vector_store %arg5[%c0_30, %c0_31, %c0_32], %205 {strides = array<i32>} : memref<1x8x640xf32, #tpu.memory_space<vmem>>, vector<1x8x640xf32>,
    return
  }
  func.func @transform_0(%arg0: i32) -> (i32, i32, i32) {
    %c0_i32 = arith.constant 0 : i32
    %c0_i32_0 = arith.constant 0 : i32
    %c0_i32_1 = arith.constant 0 : i32
    return %arg0, %c0_i32, %c0_i32_0 : i32, i32, i32
  }
  func.func @transform_1(%arg0: i32) -> (i32, i32) {
    %c0_i32 = arith.constant 0 : i32
    %c0_i32_0 = arith.constant 0 : i32
    %c0_i32_1 = arith.constant 0 : i32
    return %c0_i32, %c0_i32_0 : i32, i32
  }
  func.func @transform_2(%arg0: i32) -> (i32, i32) {
    %c0_i32 = arith.constant 0 : i32
    %c0_i32_0 = arith.constant 0 : i32
    %c0_i32_1 = arith.constant 0 : i32
    return %c0_i32, %c0_i32_0 : i32, i32
  }
  func.func @transform_3(%arg0: i32) -> (i32, i32, i32) {
    %c0_i32 = arith.constant 0 : i32
    %c0_i32_0 = arith.constant 0 : i32
    %c0_i32_1 = arith.constant 0 : i32
    %c0_i32_2 = arith.constant 0 : i32
    return %c0_i32, %c0_i32_0, %c0_i32_1 : i32, i32, i32
  }
  func.func @transform_4(%arg0: i32) -> (i32, i32, i32) {
    %c0_i32 = arith.constant 0 : i32
    %c0_i32_0 = arith.constant 0 : i32
    %c0_i32_1 = arith.constant 0 : i32
    return %arg0, %c0_i32, %c0_i32_0 : i32, i32, i32
  }
}

</mosaic_0001>

<llo_original>
// kernel: tpu_custom_call.1
$region0: #{tpu_custom_call.1}
  #allocation0 [shape = 'u32[]', space=smem, size = 0x4, offset = 0x4, fixed_abs, tag = 'smem constant byte address 0x4 - core index']
  #allocation1 [shape = 'u32[72,128]{1,0:T(1,128)}', space=vmem, size = 0x9000, scoped, tag = 'internal scratch']
  %s0 = inlined_call_operand.hbm [shape: f32[8,256], index: 0, kind: input, shape index: {}]
  %s1 = inlined_call_operand.hbm [shape: f32[8,256], index: 1, kind: output, shape index: {}]
  %s2 = sld [smem:[#allocation0]]
  $region18: #{tpu_custom_call.1} parent=0
    _
  %s4 = ssub.s32 1, %s2
  %s5 = scalar_select 0, %s4, %s2
  $region1: #{tpu_custom_call.1} parent=0
    #allocation2 [shape = 'u8[8192]{0}', space=vmem, size = 0x2000, scoped, tag = 'input window, operand 0, single buffered']
    #allocation3 [shape = 's32[1]{0}', space=sflag, size = 0x4, scoped, tag = 'scoped memory for tpu_custom_call.1']
    #allocation4 [shape = 's32[1]{0}', space=sflag, size = 0x4, scoped, tag = 'scoped memory for tpu_custom_call.1']
    #allocation5 [shape = 'u8[8192]{0}', space=vmem, size = 0x2000, scoped, tag = 'output window, operand 0, single buffered']
    %6 = vsyncpa [#allocation3], 0
    %7 = vsyncpa [#allocation4], 0
    // Predicated region
    $region2: #{tpu_custom_call.1} parent=1 // pred_check
      _
    $region3: #{tpu_custom_call.1} parent=1 // pred_check_branch
      %9 = sbr.rel (0) target = $region5
    $region4: #{tpu_custom_call.1} parent=1 // pred_region
      %11 = vsyncadd [#allocation3], 0
      %s13 = sshll.u32 %s0, 4
      %s14 = int_to_ptr.hbm [resolvable:$true] %s13
      %s15 = sshll.u32 [#allocation2], 4
      %s16 = int_to_ptr.vmem [resolvable:$true] %s15
      %18 = dma.hbm_to_vmem [thread:$0]  %s14, 256, %s16, [#allocation3]
    $region5: #{tpu_custom_call.1} parent=1 // pred_fallthru
      _
    // Predicated region
    $region6: #{tpu_custom_call.1} parent=1 // pred_check
      _
    $region7: #{tpu_custom_call.1} parent=1 // pred_check_branch
      %20 = sbr.rel (0) target = $region9
    $region8: #{tpu_custom_call.1} parent=1 // pred_region
      %22 = dma.done [#allocation3], 256
    $region9: #{tpu_custom_call.1} parent=1 // pred_fallthru
      _
    %v23 = vld [vmem:[#allocation2] sm:$0xff]
    %v24 = vld [vmem:[#allocation2 + $0x8] sm:$0xff]
    %25 = vrot.lane.b32.xlu0 %v23, 3
    %v26 = vpop.permute.xlu0 %25
    %27 = vrot.lane.b32.xlu0 %v24, 3
    %v28 = vpop.permute.xlu0 %27
    %v29 = vlaneseq
    %v30 = vand.u32 %v29, 127
    %vm31 = vcmp.lt.s32.totalorder %v30, 3
    %v32 = vsel %vm31, %v26, %v28
    %v33 = vsel %vm31, %v28, %v26
    %34 = vst [vmem:[#allocation5] sm:$0xff] %v33
    %35 = vst [vmem:[#allocation5 + $0x8] sm:$0xff] %v32
    // Predicated region
    $region10: #{tpu_custom_call.1} parent=1 // pred_check
      _
    $region11: #{tpu_custom_call.1} parent=1 // pred_check_branch
      %37 = sbr.rel (0) target = $region13
    $region12: #{tpu_custom_call.1} parent=1 // pred_region
      %39 = vsyncadd [#allocation4], 0
      %s41 = sshll.u32 [#allocation5], 4
      %s42 = int_to_ptr.vmem [resolvable:$true] %s41
      %s43 = sshll.u32 %s1, 4
      %s44 = int_to_ptr.hbm [resolvable:$true] %s43
      %46 = dma.vmem_to_hbm [thread:$0]  %s42, 256, %s44, [#allocation4]
    $region13: #{tpu_custom_call.1} parent=1 // pred_fallthru
      _
    // Predicated region
    $region14: #{tpu_custom_call.1} parent=1 // pred_check
      _
    $region15: #{tpu_custom_call.1} parent=1 // pred_check_branch
      %48 = sbr.rel (0) target = $region17
    $region16: #{tpu_custom_call.1} parent=1 // pred_region
      %50 = dma.done [#allocation4], 256
    $region17: #{tpu_custom_call.1} parent=1 // pred_fallthru
      _
    %51 = vsyncpa [#allocation3], 1
    %52 = vsyncpa [#allocation4], 1

// kernel: tpu_custom_call.1
$region0: #{tpu_custom_call.1}
  #allocation0 [shape = 'u32[]', space=smem, size = 0x4, offset = 0x4, fixed_abs, tag = 'smem constant byte address 0x4 - core index']
  #allocation1 [shape = 'u32[72,128]{1,0:T(1,128)}', space=vmem, size = 0x9000, scoped, tag = 'internal scratch']
  %s0 = inlined_call_operand.hbm [shape: f32[2,4,640], index: 0, kind: input, shape index: {}]
  %s1 = inlined_call_operand.hbm [shape: f32[8,15], index: 1, kind: input, shape index: {}]
  %s2 = inlined_call_operand.hbm [shape: f32[8,20], index: 2, kind: input, shape index: {}]
  %s3 = inlined_call_operand.hbm [shape: f32[2,8,640], index: 3, kind: input, shape index: {}]
  %s4 = inlined_call_operand.hbm [shape: f32[2,8,640], index: 4, kind: output, shape index: {}]
  %s5 = sld [smem:[#allocation0]]
  $region65: #{tpu_custom_call.1} parent=0
    _
  %s7 = ssub.s32 1, %s5
  %s8 = scalar_select 0, %s7, %s5
  $region1: #{tpu_custom_call.1} parent=0
    #allocation2 [shape = 'u8[20480]{0}', space=vmem, size = 0x5000, scoped, tag = 'input window, operand 0']
    #allocation3 [shape = 's32[2]{0}', space=sflag, size = 0x8, scoped, tag = 'scoped memory for tpu_custom_call.1']
    #allocation4 [shape = 's32[2]{0}', space=sflag, size = 0x8, scoped, tag = 'scoped memory for tpu_custom_call.1']
    #allocation5 [shape = 'u8[4096]{0}', space=vmem, size = 0x1000, scoped, tag = 'input window, operand 1, single buffered']
    #allocation6 [shape = 's32[1]{0}', space=sflag, size = 0x4, scoped, tag = 'scoped memory for tpu_custom_call.1']
    #allocation7 [shape = 'u8[4096]{0}', space=vmem, size = 0x1000, scoped, tag = 'input window, operand 2, single buffered']
    #allocation8 [shape = 'u8[40960]{0}', space=vmem, size = 0xa000, scoped, tag = 'input window, operand 3, single buffered']
    #allocation9 [shape = 's32[1]{0}', space=sflag, size = 0x4, scoped, tag = 'scoped memory for tpu_custom_call.1']
    #allocation10 [shape = 'u8[40960]{0}', space=vmem, size = 0xa000, scoped, tag = 'output window, operand 0']
    %9 = vsyncpa [#allocation3], 0
    %s10 = scalar_lea.sflag [#allocation3], 1
    %11 = vsyncpa %s10, 0
    %12 = vsyncpa [#allocation6], 0
    %13 = vsyncpa [#allocation9], 0
    %14 = vsyncpa [#allocation4], 0
    %s15 = scalar_lea.sflag [#allocation4], 1
    %16 = vsyncpa %s15, 0
    loop: start=0, step=1, limit=4
    $region2: #{tpu_custom_call.1} parent=1 // loop_pre_header
      _
    $region3: #{tpu_custom_call.1} parent=1 // loop_header
      %s18 = sphi 0, %s22
      %p19 = scmp.ge.s32.totalorder %s18, 4
      %s28 = sphi 0, %s30
      %s31 = sphi 0, %s28
      %s32 = sphi 0, %s31
      %s48 = sphi 0, %s32
      %s52 = sphi 0, %s52
      %s54 = sphi 0, %s52
      %s55 = sphi 0, %s54
      %s69 = sphi 0, %s55
      %s73 = sphi 0, %s73
      %s75 = sphi 0, %s73
      %s76 = sphi 0, %s75
      %s90 = sphi 0, %s76
      %s94 = sphi 0, %s94
      %s96 = sphi 0, %s94
      %s97 = sphi 0, %s96
      %s111 = sphi 0, %s97
      %s117 = sphi 0, %s119
      %s120 = sphi 0, %s117
      %s121 = sphi 0, %s120
      %s137 = sphi 0, %s121
    $region4: #{tpu_custom_call.1} parent=1 // loop_header_branch
      %21 = sbr.rel (%p19) target = $region8
    $region5: #{tpu_custom_call.1} parent=1 // loop_body
      %s23 = ssub.s32 %s18, 1
      %s24 = ssub.s32 %s18, 2
      %s25 = sadd.s32 %s18, 1
      %s26 = ssub.s32 %s18, %s25
      %p27 = scmp.eq.s32.totalorder %s26, 0
      %s29 = sadd.s32 %s28, 1
      %s30 = scalar_select %p27, %s28, %s29
      %p33 = pneg %p27
      %p34 = scmp.eq.s32.totalorder %s18, 1
      %p35 = por %p33, %p34
      %p36 = scmp.ne.s32.totalorder %s28, %s31
      %p37 = scmp.eq.s32.totalorder %s18, 0
      %p38 = por %p36, %p37
      %p39 = scmp.ne.s32.totalorder %s28, %s31
      %p40 = scmp.eq.s32.totalorder %s23, 1
      %p41 = por %p39, %p40
      %p42 = scmp.ne.s32.totalorder %s31, %s32
      %p43 = scmp.eq.s32.totalorder %s23, 0
      %p44 = por %p42, %p43
      %p45 = scmp.ne.s32.totalorder %s31, %s32
      %p46 = scmp.eq.s32.totalorder %s24, 1
      %p47 = por %p45, %p46
      %p49 = scmp.ne.s32.totalorder %s32, %s48
      %p50 = scmp.eq.s32.totalorder %s24, 0
      %p51 = por %p49, %p50
      %s53 = sadd.s32 %s52, 1
      %p56 = scmp.eq.s32.totalorder %s18, 1
      %p57 = scmp.ne.s32.totalorder %s52, %s54
      %p58 = scmp.eq.s32.totalorder %s18, 0
      %p59 = por %p57, %p58
      %p60 = scmp.ne.s32.totalorder %s52, %s54
      %p61 = scmp.eq.s32.totalorder %s23, 1
      %p62 = por %p60, %p61
      %p63 = scmp.ne.s32.totalorder %s54, %s55
      %p64 = scmp.eq.s32.totalorder %s23, 0
      %p65 = por %p63, %p64
      %p66 = scmp.ne.s32.totalorder %s54, %s55
      %p67 = scmp.eq.s32.totalorder %s24, 1
      %p68 = por %p66, %p67
      %p70 = scmp.ne.s32.totalorder %s55, %s69
      %p71 = scmp.eq.s32.totalorder %s24, 0
      %p72 = por %p70, %p71
      %s74 = sadd.s32 %s73, 1
      %p77 = scmp.eq.s32.totalorder %s18, 1
      %p78 = scmp.ne.s32.totalorder %s73, %s75
      %p79 = scmp.eq.s32.totalorder %s18, 0
      %p80 = por %p78, %p79
      %p81 = scmp.ne.s32.totalorder %s73, %s75
      %p82 = scmp.eq.s32.totalorder %s23, 1
      %p83 = por %p81, %p82
      %p84 = scmp.ne.s32.totalorder %s75, %s76
      %p85 = scmp.eq.s32.totalorder %s23, 0
      %p86 = por %p84, %p85
      %p87 = scmp.ne.s32.totalorder %s75, %s76
      %p88 = scmp.eq.s32.totalorder %s24, 1
      %p89 = por %p87, %p88
      %p91 = scmp.ne.s32.totalorder %s76, %s90
      %p92 = scmp.eq.s32.totalorder %s24, 0
      %p93 = por %p91, %p92
      %s95 = sadd.s32 %s94, 1
      %p98 = scmp.eq.s32.totalorder %s18, 1
      %p99 = scmp.ne.s32.totalorder %s94, %s96
      %p100 = scmp.eq.s32.totalorder %s18, 0
      %p101 = por %p99, %p100
      %p102 = scmp.ne.s32.totalorder %s94, %s96
      %p103 = scmp.eq.s32.totalorder %s23, 1
      %p104 = por %p102, %p103
      %p105 = scmp.ne.s32.totalorder %s96, %s97
      %p106 = scmp.eq.s32.totalorder %s23, 0
      %p107 = por %p105, %p106
      %p108 = scmp.ne.s32.totalorder %s96, %s97
      %p109 = scmp.eq.s32.totalorder %s24, 1
      %p110 = por %p108, %p109
      %p112 = scmp.ne.s32.totalorder %s97, %s111
      %p113 = scmp.eq.s32.totalorder %s24, 0
      %p114 = por %p112, %p113
      %s115 = ssub.s32 %s18, %s25
      %p116 = scmp.eq.s32.totalorder %s115, 0
      %s118 = sadd.s32 %s117, 1
      %s119 = scalar_select %p116, %s117, %s118
      %p122 = pneg %p116
      %p123 = scmp.eq.s32.totalorder %s18, 1
      %p124 = por %p122, %p123
      %p125 = scmp.ne.s32.totalorder %s117, %s120
      %p126 = scmp.eq.s32.totalorder %s18, 0
      %p127 = por %p125, %p126
      %p128 = scmp.ne.s32.totalorder %s117, %s120
      %p129 = scmp.eq.s32.totalorder %s23, 1
      %p130 = por %p128, %p129
      %p131 = scmp.ne.s32.totalorder %s120, %s121
      %p132 = scmp.eq.s32.totalorder %s23, 0
      %p133 = por %p131, %p132
      %p134 = scmp.ne.s32.totalorder %s120, %s121
      %p135 = scmp.eq.s32.totalorder %s24, 1
      %p136 = por %p134, %p135
      %p138 = scmp.ne.s32.totalorder %s121, %s137
      %p139 = scmp.eq.s32.totalorder %s24, 0
      %p140 = por %p138, %p139
      %p141 = scmp.le.s32.totalorder 1, %s18
      %p142 = scmp.lt.s32.totalorder %s18, 3
      %p143 = pnand %p141, %p142
      %p144 = pneg %p143
      // Predicated region
      $region9: #{tpu_custom_call.1} parent=5 // pred_check
        _
      $region10: #{tpu_custom_call.1} parent=5 // pred_check_branch
        %146 = sbr.rel (%p143) target = $region12
      $region11: #{tpu_custom_call.1} parent=5 // pred_region
        %s147 = ssub.s32 %s18, 1
        // Predicated region
        $region13: #{tpu_custom_call.1} parent=11 // pred_check
          %p148 = pneg %p65
        $region14: #{tpu_custom_call.1} parent=11 // pred_check_branch
          %150 = sbr.rel (%p148) target = $region16
        $region15: #{tpu_custom_call.1} parent=11 // pred_region
          %152 = vsyncadd [#allocation6], 0
          %s154 = sshll.u32 %s1, 4
          %s155 = int_to_ptr.hbm [resolvable:$true] %s154
          %s156 = sshll.u32 [#allocation5], 4
          %s157 = int_to_ptr.vmem [resolvable:$true] %s156
          %159 = dma.hbm_to_vmem [thread:$0]  %s155, 128, %s157, [#allocation6]
        $region16: #{tpu_custom_call.1} parent=11 // pred_fallthru
          _
        // Predicated region
        $region17: #{tpu_custom_call.1} parent=11 // pred_check
          %p160 = pneg %p86
        $region18: #{tpu_custom_call.1} parent=11 // pred_check_branch
          %162 = sbr.rel (%p160) target = $region20
        $region19: #{tpu_custom_call.1} parent=11 // pred_region
          %164 = vsyncadd [#allocation6], 0
          %s166 = sshll.u32 %s2, 4
          %s167 = int_to_ptr.hbm [resolvable:$true] %s166
          %s168 = sshll.u32 [#allocation7], 4
          %s169 = int_to_ptr.vmem [resolvable:$true] %s168
          %171 = dma.hbm_to_vmem [thread:$0]  %s167, 128, %s169, [#allocation6]
        $region20: #{tpu_custom_call.1} parent=11 // pred_fallthru
          _
        // Predicated region
        $region21: #{tpu_custom_call.1} parent=11 // pred_check
          %p172 = pneg %p107
        $region22: #{tpu_custom_call.1} parent=11 // pred_check_branch
          %174 = sbr.rel (%p172) target = $region24
        $region23: #{tpu_custom_call.1} parent=11 // pred_region
          %176 = vsyncadd [#allocation9], 0
          %s177 = sshll.u32 %s3, 4
          %s178 = int_to_ptr.hbm [resolvable:$true] %s177
          %s179 = sshll.u32 [#allocation8], 4
          %s180 = int_to_ptr.vmem [resolvable:$true] %s179
          %185 = dma.hbm_to_vmem [thread:$0]  %s178, 1280, %s180, [#allocation9], 640, 640, 40
        $region24: #{tpu_custom_call.1} parent=11 // pred_fallthru
          _
      $region12: #{tpu_custom_call.1} parent=5 // pred_fallthru
        _
      %p186 = scmp.lt.s32.totalorder %s18, 2
      // Predicated region
      $region25: #{tpu_custom_call.1} parent=5 // pred_check
        %p187 = pneg %p186
      $region26: #{tpu_custom_call.1} parent=5 // pred_check_branch
        %189 = sbr.rel (%p187) target = $region28
      $region27: #{tpu_custom_call.1} parent=5 // pred_region
        // Predicated region
        $region29: #{tpu_custom_call.1} parent=27 // pred_check
          %p190 = pneg %p38
        $region30: #{tpu_custom_call.1} parent=27 // pred_check_branch
          %192 = sbr.rel (%p190) target = $region32
        $region31: #{tpu_custom_call.1} parent=27 // pred_region
          %s193 = sand.u32 %s28, 1
          %s194 = scalar_lea.sflag [#allocation3], %s193
          %s195 = sand.u32 %s28, 1
          %s196 = smul.addr %s195, 20
          %s197 = scalar_lea.vmem [#allocation2], %s196
          %199 = vsyncadd %s194, 0
          %s200 = smul.addr %s18, 5
          %s201 = smul.addr %s200, 4
          %s202 = scalar_lea.hbm %s0, %s201
          %s204 = sshll.u32 %s202, 4
          %s205 = int_to_ptr.hbm [resolvable:$true] %s204
          %s206 = sshll.u32 %s197, 4
          %s207 = int_to_ptr.vmem [resolvable:$true] %s206
          %209 = dma.hbm_to_vmem [thread:$0]  %s205, 320, %s207, %s194
        $region32: #{tpu_custom_call.1} parent=27 // pred_fallthru
          _
      $region28: #{tpu_custom_call.1} parent=5 // pred_fallthru
        _
      %p210 = scmp.le.s32.totalorder 1, %s18
      %p211 = scmp.lt.s32.totalorder %s18, 3
      %p212 = pnand %p210, %p211
      %p213 = pneg %p212
      // Predicated region
      $region33: #{tpu_custom_call.1} parent=5 // pred_check
        _
      $region34: #{tpu_custom_call.1} parent=5 // pred_check_branch
        %215 = sbr.rel (%p212) target = $region36
      $region35: #{tpu_custom_call.1} parent=5 // pred_region
        %s216 = ssub.s32 %s18, 1
        %s217 = sand.u32 %s31, 1
        %s218 = scalar_lea.sflag [#allocation3], %s217
        %s219 = sand.u32 %s31, 1
        %s220 = smul.addr %s219, 20
        %s221 = scalar_lea.vmem [#allocation2], %s220
        // Predicated region
        $region37: #{tpu_custom_call.1} parent=35 // pred_check
          %p222 = pneg %p44
        $region38: #{tpu_custom_call.1} parent=35 // pred_check_branch
          %224 = sbr.rel (%p222) target = $region40
        $region39: #{tpu_custom_call.1} parent=35 // pred_region
          %226 = dma.done %s218, 320
        $region40: #{tpu_custom_call.1} parent=35 // pred_fallthru
          _
        // Predicated region
        $region41: #{tpu_custom_call.1} parent=35 // pred_check
          %p227 = pneg %p65
        $region42: #{tpu_custom_call.1} parent=35 // pred_check_branch
          %229 = sbr.rel (%p227) target = $region44
        $region43: #{tpu_custom_call.1} parent=35 // pred_region
          %231 = dma.done [#allocation6], 128
        $region44: #{tpu_custom_call.1} parent=35 // pred_fallthru
          _
        // Predicated region
        $region45: #{tpu_custom_call.1} parent=35 // pred_check
          %p232 = pneg %p86
        $region46: #{tpu_custom_call.1} parent=35 // pred_check_branch
          %234 = sbr.rel (%p232) target = $region48
        $region47: #{tpu_custom_call.1} parent=35 // pred_region
          %236 = dma.done [#allocation6], 128
        $region48: #{tpu_custom_call.1} parent=35 // pred_fallthru
          _
        // Predicated region
        $region49: #{tpu_custom_call.1} parent=35 // pred_check
          %p237 = pneg %p107
        $region50: #{tpu_custom_call.1} parent=35 // pred_check_branch
          %239 = sbr.rel (%p237) target = $region52
        $region51: #{tpu_custom_call.1} parent=35 // pred_region
          %241 = dma.done [#allocation9], 1280
        $region52: #{tpu_custom_call.1} parent=35 // pred_fallthru
          _
        %s242 = sand.u32 %s31, 1
        %s243 = scalar_lea.sflag [#allocation3], %s242
        %s244 = sand.u32 %s31, 1
        %s245 = smul.addr %s244, 20
        %s246 = scalar_lea.vmem [#allocation2], %s245
        %p247 = pneg %p44
        %p248 = pneg %p41
        %p249 = pneg %p65
        %p250 = pneg %p62
        %p251 = pneg %p86
        %p252 = pneg %p83
        %p253 = pneg %p107
        %p254 = pneg %p104
        %p255 = pneg %p133
        %p256 = pneg %p130
        %s257 = sand.u32 %s120, 1
        %s258 = scalar_lea.sflag [#allocation4], %s257
        %s259 = sand.u32 %s120, 1
        %s260 = smul.addr %s259, 40
        %s261 = scalar_lea.vmem [#allocation10], %s260
        %v262 = vld [vmem:[%s221] sm:$0xff]
        %v263 = vld [vmem:[%s221 + $0x8] sm:$0xff]
        %v264 = vld [vmem:[%s221 + $0x10] sm:$0xf]
        %v265 = vld [vmem:[#allocation5] sm:$0xff]
        %v266 = vld [vmem:[#allocation7] sm:$0xff]
        %v267 = vlaneseq
        %v268 = vand.u32 %v267, 127
        %v269 = vadd.s32 %v268, 128
        %v270 = vadd.s32 %v268, 256
        %v271 = vadd.s32 %v268, 384
        %v272 = vadd.s32 %v268, 512
        %vm273 = vcmp.lt.s32.totalorder %v268, 0
        %v274 = vsub.s32 0, %v268
        %v275 = vsel %vm273, %v274, %v268
        %v276 = vshrl.u32 %v275, 4
        %v277 = vand.u32 %v275, 15
        %v278 = vsub.s32 0, %v277
        %v279 = vsel %vm273, %v278, %v277
        %vm280 = vcmp.lt.s32.totalorder %v269, 0
        %v281 = vsub.s32 0, %v269
        %v282 = vsel %vm280, %v281, %v269
        %v283 = vshrl.u32 %v282, 4
        %v284 = vand.u32 %v282, 15
        %v285 = vsub.s32 0, %v284
        %v286 = vsel %vm280, %v285, %v284
        %vm287 = vcmp.lt.s32.totalorder %v270, 0
        %v288 = vsub.s32 0, %v270
        %v289 = vsel %vm287, %v288, %v270
        %v290 = vshrl.u32 %v289, 4
        %v291 = vand.u32 %v289, 15
        %v292 = vsub.s32 0, %v291
        %v293 = vsel %vm287, %v292, %v291
        %vm294 = vcmp.lt.s32.totalorder %v271, 0
        %v295 = vsub.s32 0, %v271
        %v296 = vsel %vm294, %v295, %v271
        %v297 = vshrl.u32 %v296, 4
        %v298 = vand.u32 %v296, 15
        %v299 = vsub.s32 0, %v298
        %v300 = vsel %vm294, %v299, %v298
        %vm301 = vcmp.lt.s32.totalorder %v272, 0
        %v302 = vsub.s32 0, %v272
        %v303 = vsel %vm301, %v302, %v272
        %v304 = vshrl.u32 %v303, 4
        %v305 = vand.u32 %v303, 15
        %v306 = vsub.s32 0, %v305
        %v307 = vsel %vm301, %v306, %v305
        %vm308 = vcmp.ne.s32.totalorder %v279, 0
        %vm309 = vcmp.ne.s32.totalorder %v286, 0
        %vm310 = vcmp.ne.s32.totalorder %v293, 0
        %vm311 = vcmp.ne.s32.totalorder %v300, 0
        %vm312 = vcmp.ne.s32.totalorder %v307, 0
        %vm313 = vcmp.lt.s32.totalorder %v279, 0
        %vm314 = vcmp.lt.s32.totalorder %v286, 0
        %vm315 = vcmp.lt.s32.totalorder %v293, 0
        %vm316 = vcmp.lt.s32.totalorder %v300, 0
        %vm317 = vcmp.lt.s32.totalorder %v307, 0
        %vm318 = vmand %vm313, %vm308
        %vm319 = vmand %vm314, %vm309
        %vm320 = vmand %vm315, %vm310
        %vm321 = vmand %vm316, %vm311
        %vm322 = vmand %vm317, %vm312
        %v323 = vadd.s32 %v279, 16
        %v324 = vadd.s32 %v286, 16
        %v325 = vadd.s32 %v293, 16
        %v326 = vadd.s32 %v300, 16
        %v327 = vadd.s32 %v307, 16
        %v328 = vsel %vm318, %v323, %v279
        %v329 = vsel %vm319, %v324, %v286
        %v330 = vsel %vm320, %v325, %v293
        %v331 = vsel %vm321, %v326, %v300
        %v332 = vsel %vm322, %v327, %v307
        %vm333 = vcmp.ge.s32.totalorder %v268, 32
        %vm334 = vcmp.ge.s32.totalorder %v269, 32
        %vm335 = vcmp.ge.s32.totalorder %v270, 32
        %vm336 = vcmp.ge.s32.totalorder %v271, 32
        %vm337 = vcmp.ge.s32.totalorder %v272, 32
        %vm338 = vcmp.lt.s32.totalorder %v268, 608
        %vm339 = vcmp.lt.s32.totalorder %v269, 608
        %vm340 = vcmp.lt.s32.totalorder %v270, 608
        %vm341 = vcmp.lt.s32.totalorder %v271, 608
        %vm342 = vcmp.lt.s32.totalorder %v272, 608
        %344 = vset.pattern.permute.xlu0 0
        %345 = vperm.xlu0 %344, %v266
        %v346 = vpop.permute.xlu0 %345
        %v351 = vperm.slane %v262, 0
        %v352 = vperm.slane %v262, 4
        %v353 = vperm.slane %v263, 0
        %v354 = vperm.slane %v263, 4
        %v355 = vperm.slane %v264, 0
        %v361 = vperm.slane %v351, 0
        %v362 = vperm.slane %v352, 0
        %v363 = vperm.slane %v353, 0
        %v364 = vperm.slane %v354, 0
        %v365 = vperm.slane %v355, 0
        %v366 = vmul.f32 %v346, %v361
        %v367 = vmul.f32 %v346, %v362
        %v368 = vmul.f32 %v346, %v363
        %v369 = vmul.f32 %v346, %v364
        %v370 = vmul.f32 %v346, %v365
        %371 = vset.pattern.permute.xlu0 1
        %372 = vperm.xlu0 %371, %v266
        %v373 = vpop.permute.xlu0 %372
        %v375 = vperm.slane %v262, 1
        %v376 = vperm.slane %v262, 5
        %v377 = vperm.slane %v263, 1
        %v378 = vperm.slane %v263, 5
        %v379 = vperm.slane %v264, 1
        %v385 = vperm.slane %v375, 1
        %v386 = vperm.slane %v376, 1
        %v387 = vperm.slane %v377, 1
        %v388 = vperm.slane %v378, 1
        %v389 = vperm.slane %v379, 1
        %v390 = vmul.f32 %v373, %v385
        %v391 = vmul.f32 %v373, %v386
        %v392 = vmul.f32 %v373, %v387
        %v393 = vmul.f32 %v373, %v388
        %v394 = vmul.f32 %v373, %v389
        %v395 = vadd.f32 %v366, %v390
        %v396 = vadd.f32 %v367, %v391
        %v397 = vadd.f32 %v368, %v392
        %v398 = vadd.f32 %v369, %v393
        %v399 = vadd.f32 %v370, %v394
        %400 = vset.pattern.permute.xlu0 2
        %401 = vperm.xlu0 %400, %v266
        %v402 = vpop.permute.xlu0 %401
        %v404 = vperm.slane %v262, 2
        %v405 = vperm.slane %v262, 6
        %v406 = vperm.slane %v263, 2
        %v407 = vperm.slane %v263, 6
        %v408 = vperm.slane %v264, 2
        %v414 = vperm.slane %v404, 2
        %v415 = vperm.slane %v405, 2
        %v416 = vperm.slane %v406, 2
        %v417 = vperm.slane %v407, 2
        %v418 = vperm.slane %v408, 2
        %v419 = vmul.f32 %v402, %v414
        %v420 = vmul.f32 %v402, %v415
        %v421 = vmul.f32 %v402, %v416
        %v422 = vmul.f32 %v402, %v417
        %v423 = vmul.f32 %v402, %v418
        %v424 = vadd.f32 %v395, %v419
        %v425 = vadd.f32 %v396, %v420
        %v426 = vadd.f32 %v397, %v421
        %v427 = vadd.f32 %v398, %v422
        %v428 = vadd.f32 %v399, %v423
        %429 = vset.pattern.permute.xlu0 3
        %430 = vperm.xlu0 %429, %v266
        %v431 = vpop.permute.xlu0 %430
        %v433 = vperm.slane %v262, 3
        %v434 = vperm.slane %v262, 7
        %v435 = vperm.slane %v263, 3
        %v436 = vperm.slane %v263, 7
        %v437 = vperm.slane %v264, 3
        %v443 = vperm.slane %v433, 3
        %v444 = vperm.slane %v434, 3
        %v445 = vperm.slane %v435, 3
        %v446 = vperm.slane %v436, 3
        %v447 = vperm.slane %v437, 3
        %v448 = vmul.f32 %v431, %v443
        %v449 = vmul.f32 %v431, %v444
        %v450 = vmul.f32 %v431, %v445
        %v451 = vmul.f32 %v431, %v446
        %v452 = vmul.f32 %v431, %v447
        %v453 = vadd.f32 %v424, %v448
        %v454 = vadd.f32 %v425, %v449
        %v455 = vadd.f32 %v426, %v450
        %v456 = vadd.f32 %v427, %v451
        %v457 = vadd.f32 %v428, %v452
        %459 = vset.pattern.permute.xlu0 0
        %460 = vperm.xlu0 %459, %v265
        %v461 = vpop.permute.xlu0 %460
        %v463 = vadd.f32 %v453, %v461
        %v464 = vadd.f32 %v454, %v461
        %v465 = vadd.f32 %v455, %v461
        %v466 = vadd.f32 %v456, %v461
        %v467 = vadd.f32 %v457, %v461
        %vm468 = vcmp.gt.f32.partialorder %v463, 0.0
        %vm469 = vcmp.gt.f32.partialorder %v464, 0.0
        %vm470 = vcmp.gt.f32.partialorder %v465, 0.0
        %vm471 = vcmp.gt.f32.partialorder %v466, 0.0
        %vm472 = vcmp.gt.f32.partialorder %v467, 0.0
        %v473 = vmul.f32 %v463, 0.01
        %v474 = vmul.f32 %v464, 0.01
        %v475 = vmul.f32 %v465, 0.01
        %v476 = vmul.f32 %v466, 0.01
        %v477 = vmul.f32 %v467, 0.01
        %v478 = vsel %vm468, %v463, %v473
        %v479 = vsel %vm469, %v464, %v474
        %v480 = vsel %vm470, %v465, %v475
        %v481 = vsel %vm471, %v466, %v476
        %v482 = vsel %vm472, %v467, %v477
        %vm483 = vcmp.ge.s32.totalorder %v328, 1
        %vm484 = vcmp.ge.s32.totalorder %v329, 1
        %vm485 = vcmp.ge.s32.totalorder %v330, 1
        %vm486 = vcmp.ge.s32.totalorder %v331, 1
        %vm487 = vcmp.ge.s32.totalorder %v332, 1
        %489 = vrot.lane.b32.xlu0 %v482, 1
        %v490 = vpop.permute.xlu0 %489
        %496 = vrot.lane.b32.xlu0 %v478, 1
        %v497 = vpop.permute.xlu0 %496
        %498 = vrot.lane.b32.xlu0 %v479, 1
        %v499 = vpop.permute.xlu0 %498
        %500 = vrot.lane.b32.xlu0 %v480, 1
        %v501 = vpop.permute.xlu0 %500
        %502 = vrot.lane.b32.xlu0 %v481, 1
        %v503 = vpop.permute.xlu0 %502
        %vm504 = vcmask 7168
        %v505 = vsel %vm504, %v497, %v499
        %v506 = vsel %vm504, %v499, %v501
        %v507 = vsel %vm504, %v501, %v503
        %v508 = vsel %vm504, %v503, %v490
        %v514 = vsel %vm504, %v490, %v497
        %v515 = vsel %vm483, 1, 0
        %v516 = vsel %vm484, 1, 0
        %v517 = vsel %vm485, 1, 0
        %v518 = vsel %vm486, 1, 0
        %v519 = vsel %vm487, 1, 0
        %vm520 = vcmp.eq.s32.totalorder %v515, 1
        %vm521 = vcmp.eq.s32.totalorder %v516, 1
        %vm522 = vcmp.eq.s32.totalorder %v517, 1
        %vm523 = vcmp.eq.s32.totalorder %v518, 1
        %vm524 = vcmp.eq.s32.totalorder %v519, 1
        %v525 = vsel %vm520, %v514, 0.0
        %v526 = vsel %vm521, %v505, 0.0
        %v527 = vsel %vm522, %v506, 0.0
        %v528 = vsel %vm523, %v507, 0.0
        %v529 = vsel %vm524, %v508, 0.0
        %vm530 = vcmp.lt.s32.totalorder %v328, 15
        %vm531 = vcmp.lt.s32.totalorder %v329, 15
        %vm532 = vcmp.lt.s32.totalorder %v330, 15
        %vm533 = vcmp.lt.s32.totalorder %v331, 15
        %vm534 = vcmp.lt.s32.totalorder %v332, 15
        %535 = vrot.lane.b32.xlu0 %v478, 127
        %v536 = vpop.permute.xlu0 %535
        %537 = vrot.lane.b32.xlu0 %v479, 127
        %v538 = vpop.permute.xlu0 %537
        %539 = vrot.lane.b32.xlu0 %v480, 127
        %v540 = vpop.permute.xlu0 %539
        %541 = vrot.lane.b32.xlu0 %v481, 127
        %v542 = vpop.permute.xlu0 %541
        %543 = vrot.lane.b32.xlu0 %v482, 127
        %v544 = vpop.permute.xlu0 %543
        %vm545 = vcmask 1039360
        %v546 = vsel %vm545, %v536, %v538
        %v547 = vsel %vm545, %v538, %v540
        %v548 = vsel %vm545, %v540, %v542
        %v549 = vsel %vm545, %v542, %v544
        %v556 = vsel %vm545, %v544, %v536
        %v557 = vsel %vm530, 1, 0
        %v558 = vsel %vm531, 1, 0
        %v559 = vsel %vm532, 1, 0
        %v560 = vsel %vm533, 1, 0
        %v561 = vsel %vm534, 1, 0
        %vm562 = vcmp.eq.s32.totalorder %v557, 1
        %vm563 = vcmp.eq.s32.totalorder %v558, 1
        %vm564 = vcmp.eq.s32.totalorder %v559, 1
        %vm565 = vcmp.eq.s32.totalorder %v560, 1
        %vm566 = vcmp.eq.s32.totalorder %v561, 1
        %v567 = vsel %vm562, %v546, 0.0
        %v568 = vsel %vm563, %v547, 0.0
        %v569 = vsel %vm564, %v548, 0.0
        %v570 = vsel %vm565, %v549, 0.0
        %v571 = vsel %vm566, %v556, 0.0
        %572 = vset.pattern.permute.xlu0 10
        %573 = vperm.xlu0 %572, %v265
        %v574 = vpop.permute.xlu0 %573
        %v576 = vmul.f32 %v478, %v574
        %v577 = vmul.f32 %v479, %v574
        %v578 = vmul.f32 %v480, %v574
        %v579 = vmul.f32 %v481, %v574
        %v580 = vmul.f32 %v482, %v574
        %581 = vset.pattern.permute.xlu0 9
        %582 = vperm.xlu0 %581, %v265
        %v583 = vpop.permute.xlu0 %582
        %v585 = vmul.f32 %v525, %v583
        %v586 = vmul.f32 %v526, %v583
        %v587 = vmul.f32 %v527, %v583
        %v588 = vmul.f32 %v528, %v583
        %v589 = vmul.f32 %v529, %v583
        %v590 = vadd.f32 %v576, %v585
        %v591 = vadd.f32 %v577, %v586
        %v592 = vadd.f32 %v578, %v587
        %v593 = vadd.f32 %v579, %v588
        %v594 = vadd.f32 %v580, %v589
        %595 = vset.pattern.permute.xlu0 11
        %596 = vperm.xlu0 %595, %v265
        %v597 = vpop.permute.xlu0 %596
        %v599 = vmul.f32 %v567, %v597
        %v600 = vmul.f32 %v568, %v597
        %v601 = vmul.f32 %v569, %v597
        %v602 = vmul.f32 %v570, %v597
        %v603 = vmul.f32 %v571, %v597
        %v604 = vadd.f32 %v590, %v599
        %v605 = vadd.f32 %v591, %v600
        %v606 = vadd.f32 %v592, %v601
        %v607 = vadd.f32 %v593, %v602
        %v608 = vadd.f32 %v594, %v603
        %609 = vset.pattern.permute.xlu0 7
        %610 = vperm.xlu0 %609, %v265
        %v611 = vpop.permute.xlu0 %610
        %v613 = vmul.f32 %v478, %v611
        %v614 = vmul.f32 %v479, %v611
        %v615 = vmul.f32 %v480, %v611
        %v616 = vmul.f32 %v481, %v611
        %v617 = vmul.f32 %v482, %v611
        %618 = vset.pattern.permute.xlu0 6
        %619 = vperm.xlu0 %618, %v265
        %v620 = vpop.permute.xlu0 %619
        %v622 = vmul.f32 %v525, %v620
        %v623 = vmul.f32 %v526, %v620
        %v624 = vmul.f32 %v527, %v620
        %v625 = vmul.f32 %v528, %v620
        %v626 = vmul.f32 %v529, %v620
        %v627 = vadd.f32 %v613, %v622
        %v628 = vadd.f32 %v614, %v623
        %v629 = vadd.f32 %v615, %v624
        %v630 = vadd.f32 %v616, %v625
        %v631 = vadd.f32 %v617, %v626
        %632 = vset.pattern.permute.xlu0 8
        %633 = vperm.xlu0 %632, %v265
        %v634 = vpop.permute.xlu0 %633
        %v636 = vmul.f32 %v567, %v634
        %v637 = vmul.f32 %v568, %v634
        %v638 = vmul.f32 %v569, %v634
        %v639 = vmul.f32 %v570, %v634
        %v640 = vmul.f32 %v571, %v634
        %v641 = vadd.f32 %v627, %v636
        %v642 = vadd.f32 %v628, %v637
        %v643 = vadd.f32 %v629, %v638
        %v644 = vadd.f32 %v630, %v639
        %v645 = vadd.f32 %v631, %v640
        %647 = vrot.lane.b32.xlu0 %v645, 32
        %v648 = vpop.permute.xlu0 %647
        %654 = vrot.lane.b32.xlu0 %v641, 32
        %v655 = vpop.permute.xlu0 %654
        %656 = vrot.lane.b32.xlu0 %v642, 32
        %v657 = vpop.permute.xlu0 %656
        %658 = vrot.lane.b32.xlu0 %v643, 32
        %v659 = vpop.permute.xlu0 %658
        %660 = vrot.lane.b32.xlu0 %v644, 32
        %v661 = vpop.permute.xlu0 %660
        %vm662 = vcmask 261120
        %v663 = vsel %vm662, %v655, %v657
        %v664 = vsel %vm662, %v657, %v659
        %v665 = vsel %vm662, %v659, %v661
        %v666 = vsel %vm662, %v661, %v648
        %v672 = vsel %vm662, %v648, %v655
        %v673 = vsel %vm333, 1, 0
        %v674 = vsel %vm334, 1, 0
        %v675 = vsel %vm335, 1, 0
        %v676 = vsel %vm336, 1, 0
        %v677 = vsel %vm337, 1, 0
        %vm678 = vcmp.eq.s32.totalorder %v673, 1
        %vm679 = vcmp.eq.s32.totalorder %v674, 1
        %vm680 = vcmp.eq.s32.totalorder %v675, 1
        %vm681 = vcmp.eq.s32.totalorder %v676, 1
        %vm682 = vcmp.eq.s32.totalorder %v677, 1
        %v683 = vsel %vm678, %v672, 0.0
        %v684 = vsel %vm679, %v663, 0.0
        %v685 = vsel %vm680, %v664, 0.0
        %v686 = vsel %vm681, %v665, 0.0
        %v687 = vsel %vm682, %v666, 0.0
        %v688 = vadd.f32 %v604, %v683
        %v689 = vadd.f32 %v605, %v684
        %v690 = vadd.f32 %v606, %v685
        %v691 = vadd.f32 %v607, %v686
        %v692 = vadd.f32 %v608, %v687
        %693 = vset.pattern.permute.xlu0 13
        %694 = vperm.xlu0 %693, %v265
        %v695 = vpop.permute.xlu0 %694
        %v697 = vmul.f32 %v478, %v695
        %v698 = vmul.f32 %v479, %v695
        %v699 = vmul.f32 %v480, %v695
        %v700 = vmul.f32 %v481, %v695
        %v701 = vmul.f32 %v482, %v695
        %702 = vset.pattern.permute.xlu0 12
        %703 = vperm.xlu0 %702, %v265
        %v704 = vpop.permute.xlu0 %703
        %v706 = vmul.f32 %v525, %v704
        %v707 = vmul.f32 %v526, %v704
        %v708 = vmul.f32 %v527, %v704
        %v709 = vmul.f32 %v528, %v704
        %v710 = vmul.f32 %v529, %v704
        %v711 = vadd.f32 %v697, %v706
        %v712 = vadd.f32 %v698, %v707
        %v713 = vadd.f32 %v699, %v708
        %v714 = vadd.f32 %v700, %v709
        %v715 = vadd.f32 %v701, %v710
        %716 = vset.pattern.permute.xlu0 14
        %717 = vperm.xlu0 %716, %v265
        %v718 = vpop.permute.xlu0 %717
        %v720 = vmul.f32 %v567, %v718
        %v721 = vmul.f32 %v568, %v718
        %v722 = vmul.f32 %v569, %v718
        %v723 = vmul.f32 %v570, %v718
        %v724 = vmul.f32 %v571, %v718
        %v725 = vadd.f32 %v711, %v720
        %v726 = vadd.f32 %v712, %v721
        %v727 = vadd.f32 %v713, %v722
        %v728 = vadd.f32 %v714, %v723
        %v729 = vadd.f32 %v715, %v724
        %735 = vrot.lane.b32.xlu0 %v725, 96
        %v736 = vpop.permute.xlu0 %735
        %737 = vrot.lane.b32.xlu0 %v726, 96
        %v738 = vpop.permute.xlu0 %737
        %739 = vrot.lane.b32.xlu0 %v727, 96
        %v740 = vpop.permute.xlu0 %739
        %741 = vrot.lane.b32.xlu0 %v728, 96
        %v742 = vpop.permute.xlu0 %741
        %743 = vrot.lane.b32.xlu0 %v729, 96
        %v744 = vpop.permute.xlu0 %743
        %vm745 = vcmask 785408
        %v746 = vsel %vm745, %v736, %v738
        %v747 = vsel %vm745, %v738, %v740
        %v748 = vsel %vm745, %v740, %v742
        %v749 = vsel %vm745, %v742, %v744
        %v756 = vsel %vm745, %v744, %v736
        %v757 = vsel %vm338, 1, 0
        %v758 = vsel %vm339, 1, 0
        %v759 = vsel %vm340, 1, 0
        %v760 = vsel %vm341, 1, 0
        %v761 = vsel %vm342, 1, 0
        %vm762 = vcmp.eq.s32.totalorder %v757, 1
        %vm763 = vcmp.eq.s32.totalorder %v758, 1
        %vm764 = vcmp.eq.s32.totalorder %v759, 1
        %vm765 = vcmp.eq.s32.totalorder %v760, 1
        %vm766 = vcmp.eq.s32.totalorder %v761, 1
        %v767 = vsel %vm762, %v746, 0.0
        %v768 = vsel %vm763, %v747, 0.0
        %v769 = vsel %vm764, %v748, 0.0
        %v770 = vsel %vm765, %v749, 0.0
        %v771 = vsel %vm766, %v756, 0.0
        %v772 = vadd.f32 %v688, %v767
        %v773 = vadd.f32 %v689, %v768
        %v774 = vadd.f32 %v690, %v769
        %v775 = vadd.f32 %v691, %v770
        %v776 = vadd.f32 %v692, %v771
        %v777 = vld [vmem:[#allocation8] sm:$0xff]
        %v778 = vld [vmem:[#allocation8 + $0x8] sm:$0xff]
        %v779 = vld [vmem:[#allocation8 + $0x10] sm:$0xff]
        %v780 = vld [vmem:[#allocation8 + $0x18] sm:$0xff]
        %v781 = vld [vmem:[#allocation8 + $0x20] sm:$0xff]
        %v782 = vmul.f32 %v772, %v777
        %v783 = vmul.f32 %v773, %v778
        %v784 = vmul.f32 %v774, %v779
        %v785 = vmul.f32 %v775, %v780
        %v786 = vmul.f32 %v776, %v781
        %s787 = scalar_lea.vmem [#allocation8], 40
        %v788 = vld [vmem:[%s787] sm:$0xff]
        %v789 = vld [vmem:[%s787 + $0x8] sm:$0xff]
        %v790 = vld [vmem:[%s787 + $0x10] sm:$0xff]
        %v791 = vld [vmem:[%s787 + $0x18] sm:$0xff]
        %v792 = vld [vmem:[%s787 + $0x20] sm:$0xff]
        %v793 = vadd.f32 %v782, %v788
        %v794 = vadd.f32 %v783, %v789
        %v795 = vadd.f32 %v784, %v790
        %v796 = vadd.f32 %v785, %v791
        %v797 = vadd.f32 %v786, %v792
        %803 = vrot.lane.b32.xlu0 %v793, 96
        %v804 = vpop.permute.xlu0 %803
        %805 = vrot.lane.b32.xlu0 %v794, 96
        %v806 = vpop.permute.xlu0 %805
        %807 = vrot.lane.b32.xlu0 %v795, 96
        %v808 = vpop.permute.xlu0 %807
        %809 = vrot.lane.b32.xlu0 %v796, 96
        %v810 = vpop.permute.xlu0 %809
        %811 = vrot.lane.b32.xlu0 %v797, 96
        %v812 = vpop.permute.xlu0 %811
        %v813 = vsel %vm745, %v804, %v806
        %v814 = vsel %vm745, %v806, %v808
        %v815 = vsel %vm745, %v808, %v810
        %v816 = vsel %vm745, %v810, %v812
        %v823 = vsel %vm745, %v812, %v804
        %v824 = vadd.f32 %v793, %v813
        %v825 = vadd.f32 %v794, %v814
        %v826 = vadd.f32 %v795, %v815
        %v827 = vadd.f32 %v796, %v816
        %v828 = vadd.f32 %v797, %v823
        %834 = vrot.lane.b32.xlu0 %v824, 64
        %v835 = vpop.permute.xlu0 %834
        %836 = vrot.lane.b32.xlu0 %v825, 64
        %v837 = vpop.permute.xlu0 %836
        %838 = vrot.lane.b32.xlu0 %v826, 64
        %v839 = vpop.permute.xlu0 %838
        %840 = vrot.lane.b32.xlu0 %v827, 64
        %v841 = vpop.permute.xlu0 %840
        %842 = vrot.lane.b32.xlu0 %v828, 64
        %v843 = vpop.permute.xlu0 %842
        %vm844 = vcmask 523264
        %v845 = vsel %vm844, %v835, %v837
        %v846 = vsel %vm844, %v837, %v839
        %v847 = vsel %vm844, %v839, %v841
        %v848 = vsel %vm844, %v841, %v843
        %v855 = vsel %vm844, %v843, %v835
        %v856 = vadd.f32 %v824, %v845
        %v857 = vadd.f32 %v825, %v846
        %v858 = vadd.f32 %v826, %v847
        %v859 = vadd.f32 %v827, %v848
        %v860 = vadd.f32 %v828, %v855
        %v861 = vadd.f32 %v856, %v857
        %v862 = vadd.f32 %v857, %v858
        %v863 = vadd.f32 %v858, %v859
        %v864 = vadd.f32 %v859, %v860
        %v865 = vadd.f32 %v860, %v856
        %v866 = vadd.f32 %v861, %v863
        %v867 = vadd.f32 %v862, %v864
        %v868 = vadd.f32 %v863, %v865
        %v869 = vadd.f32 %v864, %v861
        %v870 = vadd.f32 %v865, %v862
        %v871 = vadd.f32 %v856, %v867
        %v872 = vadd.f32 %v857, %v868
        %v873 = vadd.f32 %v858, %v869
        %v874 = vadd.f32 %v859, %v870
        %v875 = vadd.f32 %v860, %v866
        %v876 = vmul.f32 %v871, 0.05
        %v877 = vmul.f32 %v872, 0.05
        %v878 = vmul.f32 %v873, 0.05
        %v879 = vmul.f32 %v874, 0.05
        %v880 = vmul.f32 %v875, 0.05
        %882 = vrot.lane.b32.xlu0 %v880, 1
        %v883 = vpop.permute.xlu0 %882
        %889 = vrot.lane.b32.xlu0 %v876, 1
        %v890 = vpop.permute.xlu0 %889
        %891 = vrot.lane.b32.xlu0 %v877, 1
        %v892 = vpop.permute.xlu0 %891
        %893 = vrot.lane.b32.xlu0 %v878, 1
        %v894 = vpop.permute.xlu0 %893
        %895 = vrot.lane.b32.xlu0 %v879, 1
        %v896 = vpop.permute.xlu0 %895
        %v897 = vsel %vm504, %v890, %v892
        %v898 = vsel %vm504, %v892, %v894
        %v899 = vsel %vm504, %v894, %v896
        %v900 = vsel %vm504, %v896, %v883
        %v906 = vsel %vm504, %v883, %v890
        %v907 = vsel %vm520, %v906, 0.0
        %v908 = vsel %vm521, %v897, 0.0
        %v909 = vsel %vm522, %v898, 0.0
        %v910 = vsel %vm523, %v899, 0.0
        %v911 = vsel %vm524, %v900, 0.0
        %912 = vrot.lane.b32.xlu0 %v876, 127
        %v913 = vpop.permute.xlu0 %912
        %914 = vrot.lane.b32.xlu0 %v877, 127
        %v915 = vpop.permute.xlu0 %914
        %916 = vrot.lane.b32.xlu0 %v878, 127
        %v917 = vpop.permute.xlu0 %916
        %918 = vrot.lane.b32.xlu0 %v879, 127
        %v919 = vpop.permute.xlu0 %918
        %920 = vrot.lane.b32.xlu0 %v880, 127
        %v921 = vpop.permute.xlu0 %920
        %v922 = vsel %vm545, %v913, %v915
        %v923 = vsel %vm545, %v915, %v917
        %v924 = vsel %vm545, %v917, %v919
        %v925 = vsel %vm545, %v919, %v921
        %v932 = vsel %vm545, %v921, %v913
        %v933 = vsel %vm562, %v922, 0.0
        %v934 = vsel %vm563, %v923, 0.0
        %v935 = vsel %vm564, %v924, 0.0
        %v936 = vsel %vm565, %v925, 0.0
        %v937 = vsel %vm566, %v932, 0.0
        %938 = vset.pattern.permute.xlu0 4
        %939 = vperm.xlu0 %938, %v265
        %v940 = vpop.permute.xlu0 %939
        %v942 = vmul.f32 %v876, %v940
        %v943 = vmul.f32 %v877, %v940
        %v944 = vmul.f32 %v878, %v940
        %v945 = vmul.f32 %v879, %v940
        %v946 = vmul.f32 %v880, %v940
        %947 = vset.pattern.permute.xlu0 3
        %948 = vperm.xlu0 %947, %v265
        %v949 = vpop.permute.xlu0 %948
        %v951 = vmul.f32 %v907, %v949
        %v952 = vmul.f32 %v908, %v949
        %v953 = vmul.f32 %v909, %v949
        %v954 = vmul.f32 %v910, %v949
        %v955 = vmul.f32 %v911, %v949
        %v956 = vadd.f32 %v942, %v951
        %v957 = vadd.f32 %v943, %v952
        %v958 = vadd.f32 %v944, %v953
        %v959 = vadd.f32 %v945, %v954
        %v960 = vadd.f32 %v946, %v955
        %961 = vset.pattern.permute.xlu0 5
        %962 = vperm.xlu0 %961, %v265
        %v963 = vpop.permute.xlu0 %962
        %v965 = vmul.f32 %v933, %v963
        %v966 = vmul.f32 %v934, %v963
        %v967 = vmul.f32 %v935, %v963
        %v968 = vmul.f32 %v936, %v963
        %v969 = vmul.f32 %v937, %v963
        %v970 = vadd.f32 %v956, %v965
        %v971 = vadd.f32 %v957, %v966
        %v972 = vadd.f32 %v958, %v967
        %v973 = vadd.f32 %v959, %v968
        %v974 = vadd.f32 %v960, %v969
        %975 = vset.pattern.permute.xlu0 1
        %976 = vperm.xlu0 %975, %v265
        %v977 = vpop.permute.xlu0 %976
        %979 = vrot.lane.b32.xlu0 %v266, 124
        %v980 = vpop.permute.xlu0 %979
        %vm981 = vcmask 64512
        %v982 = vsel %vm981, %v980, 0
        %984 = vmatpush.msra.mxu0 0.0
        %985 = vmatpush.msra.mxu0 0.0
        %986 = vmatpush.msra.mxu0 0.0
        %987 = vmatpush.msra.mxu0 0.0
        %988 = vmatpush.msra.mxu0 0.0
        %989 = vmatpush.msra.mxu0 0.0
        %990 = vmatpush.msra.mxu0 0.0
        %991 = vmatpush.msra.mxu0 0.0
        %992 = vmatpush.msra.mxu0 0.0
        %993 = vmatpush.msra.mxu0 0.0
        %994 = vmatpush.msra.mxu0 0.0
        %995 = vmatpush.msra.mxu0 0.0
        %996 = vmatpush.msra.mxu0 0.0
        %997 = vmatpush.msra.mxu0 0.0
        %998 = vmatpush.msra.mxu0 0.0
        %999 = vmatpush.msra.mxu0 %v970
        %1000 = vmatmul.f32.gmra.mxu0 %v982
        %v1001 = vpop.f32.mrf.mxu0
        %v1002 = vadd.f32 %v977, %v1001
        %1003 = vdwg.mxu0
        %1004 = vmatpush.msra.mxu0 0.0
        %1005 = vmatpush.msra.mxu0 0.0
        %1006 = vmatpush.msra.mxu0 0.0
        %1007 = vmatpush.msra.mxu0 0.0
        %1008 = vmatpush.msra.mxu0 0.0
        %1009 = vmatpush.msra.mxu0 0.0
        %1010 = vmatpush.msra.mxu0 0.0
        %1011 = vmatpush.msra.mxu0 0.0
        %1012 = vmatpush.msra.mxu0 0.0
        %1013 = vmatpush.msra.mxu0 0.0
        %1014 = vmatpush.msra.mxu0 0.0
        %1015 = vmatpush.msra.mxu0 0.0
        %1016 = vmatpush.msra.mxu0 0.0
        %1017 = vmatpush.msra.mxu0 0.0
        %1018 = vmatpush.msra.mxu0 0.0
        %1019 = vmatpush.msra.mxu0 %v971
        %1020 = vmatmul.f32.gmra.mxu0 %v982
        %v1021 = vpop.f32.mrf.mxu0
        %v1022 = vadd.f32 %v977, %v1021
        %1023 = vdwg.mxu0
        %1024 = vmatpush.msra.mxu0 0.0
        %1025 = vmatpush.msra.mxu0 0.0
        %1026 = vmatpush.msra.mxu0 0.0
        %1027 = vmatpush.msra.mxu0 0.0
        %1028 = vmatpush.msra.mxu0 0.0
        %1029 = vmatpush.msra.mxu0 0.0
        %1030 = vmatpush.msra.mxu0 0.0
        %1031 = vmatpush.msra.mxu0 0.0
        %1032 = vmatpush.msra.mxu0 0.0
        %1033 = vmatpush.msra.mxu0 0.0
        %1034 = vmatpush.msra.mxu0 0.0
        %1035 = vmatpush.msra.mxu0 0.0
        %1036 = vmatpush.msra.mxu0 0.0
        %1037 = vmatpush.msra.mxu0 0.0
        %1038 = vmatpush.msra.mxu0 0.0
        %1039 = vmatpush.msra.mxu0 %v972
        %1040 = vmatmul.f32.gmra.mxu0 %v982
        %v1041 = vpop.f32.mrf.mxu0
        %v1042 = vadd.f32 %v977, %v1041
        %1043 = vdwg.mxu0
        %1044 = vmatpush.msra.mxu0 0.0
        %1045 = vmatpush.msra.mxu0 0.0
        %1046 = vmatpush.msra.mxu0 0.0
        %1047 = vmatpush.msra.mxu0 0.0
        %1048 = vmatpush.msra.mxu0 0.0
        %1049 = vmatpush.msra.mxu0 0.0
        %1050 = vmatpush.msra.mxu0 0.0
        %1051 = vmatpush.msra.mxu0 0.0
        %1052 = vmatpush.msra.mxu0 0.0
        %1053 = vmatpush.msra.mxu0 0.0
        %1054 = vmatpush.msra.mxu0 0.0
        %1055 = vmatpush.msra.mxu0 0.0
        %1056 = vmatpush.msra.mxu0 0.0
        %1057 = vmatpush.msra.mxu0 0.0
        %1058 = vmatpush.msra.mxu0 0.0
        %1059 = vmatpush.msra.mxu0 %v973
        %1060 = vmatmul.f32.gmra.mxu0 %v982
        %v1061 = vpop.f32.mrf.mxu0
        %v1062 = vadd.f32 %v977, %v1061
        %1063 = vdwg.mxu0
        %1064 = vmatpush.msra.mxu0 0.0
        %1065 = vmatpush.msra.mxu0 0.0
        %1066 = vmatpush.msra.mxu0 0.0
        %1067 = vmatpush.msra.mxu0 0.0
        %1068 = vmatpush.msra.mxu0 0.0
        %1069 = vmatpush.msra.mxu0 0.0
        %1070 = vmatpush.msra.mxu0 0.0
        %1071 = vmatpush.msra.mxu0 0.0
        %1072 = vmatpush.msra.mxu0 0.0
        %1073 = vmatpush.msra.mxu0 0.0
        %1074 = vmatpush.msra.mxu0 0.0
        %1075 = vmatpush.msra.mxu0 0.0
        %1076 = vmatpush.msra.mxu0 0.0
        %1077 = vmatpush.msra.mxu0 0.0
        %1078 = vmatpush.msra.mxu0 0.0
        %1079 = vmatpush.msra.mxu0 %v974
        %1080 = vmatmul.f32.gmra.mxu0 %v982
        %v1081 = vpop.f32.mrf.mxu0
        %v1082 = vadd.f32 %v977, %v1081
        %1083 = vdwg.mxu0
        %v1084 = vxor.u32 %v1002, 2147483648
        %v1085 = vxor.u32 %v1022, 2147483648
        %v1086 = vxor.u32 %v1042, 2147483648
        %v1087 = vxor.u32 %v1062, 2147483648
        %v1088 = vxor.u32 %v1082, 2147483648
        %v1089 = vmul.f32 %v1084, 1.442695
        %v1090 = vpow.pop %v1089
        %v1091 = vmul.f32 %v1085, 1.442695
        %v1092 = vpow.pop %v1091
        %v1093 = vmul.f32 %v1086, 1.442695
        %v1094 = vpow.pop %v1093
        %v1095 = vmul.f32 %v1087, 1.442695
        %v1096 = vpow.pop %v1095
        %v1097 = vmul.f32 %v1088, 1.442695
        %v1098 = vpow.pop %v1097
        %v1099 = vadd.f32 %v1090, 1.0
        %v1100 = vadd.f32 %v1092, 1.0
        %v1101 = vadd.f32 %v1094, 1.0
        %v1102 = vadd.f32 %v1096, 1.0
        %v1103 = vadd.f32 %v1098, 1.0
        %v1104 = vrcp.pop %v1099
        %v1105 = vmul.f32 %v1099, %v1104
        %v1106 = vsub.f32 1.0, %v1105
        %v1107 = vmul.f32 %v1104, %v1106
        %v1108 = vadd.f32 %v1104, %v1107
        %vm1109 = vweird.f32 %v1099
        %vm1110 = vweird.f32 %v1104
        %vm1111 = vmor %vm1109, %vm1110
        %v1112 = vsel %vm1111, %v1104, %v1108
        %v1113 = vand.u32 2147483647, %v1099
        %vm1114 = vcmp.eq.f32.partialorder %v1113, 8.507059e+37
        %v1115 = vand.u32 %v1099, 2147483648
        %v1116 = vor.u32 1.1754944e-38, %v1115
        %v1117 = vsel %vm1114, %v1116, %v1112
        %v1118 = vmul.f32 1.0, %v1117
        %v1119 = vrcp.pop %v1100
        %v1120 = vmul.f32 %v1100, %v1119
        %v1121 = vsub.f32 1.0, %v1120
        %v1122 = vmul.f32 %v1119, %v1121
        %v1123 = vadd.f32 %v1119, %v1122
        %vm1124 = vweird.f32 %v1100
        %vm1125 = vweird.f32 %v1119
        %vm1126 = vmor %vm1124, %vm1125
        %v1127 = vsel %vm1126, %v1119, %v1123
        %v1128 = vand.u32 2147483647, %v1100
        %vm1129 = vcmp.eq.f32.partialorder %v1128, 8.507059e+37
        %v1130 = vand.u32 %v1100, 2147483648
        %v1131 = vor.u32 1.1754944e-38, %v1130
        %v1132 = vsel %vm1129, %v1131, %v1127
        %v1133 = vmul.f32 1.0, %v1132
        %v1134 = vrcp.pop %v1101
        %v1135 = vmul.f32 %v1101, %v1134
        %v1136 = vsub.f32 1.0, %v1135
        %v1137 = vmul.f32 %v1134, %v1136
        %v1138 = vadd.f32 %v1134, %v1137
        %vm1139 = vweird.f32 %v1101
        %vm1140 = vweird.f32 %v1134
        %vm1141 = vmor %vm1139, %vm1140
        %v1142 = vsel %vm1141, %v1134, %v1138
        %v1143 = vand.u32 2147483647, %v1101
        %vm1144 = vcmp.eq.f32.partialorder %v1143, 8.507059e+37
        %v1145 = vand.u32 %v1101, 2147483648
        %v1146 = vor.u32 1.1754944e-38, %v1145
        %v1147 = vsel %vm1144, %v1146, %v1142
        %v1148 = vmul.f32 1.0, %v1147
        %v1149 = vrcp.pop %v1102
        %v1150 = vmul.f32 %v1102, %v1149
        %v1151 = vsub.f32 1.0, %v1150
        %v1152 = vmul.f32 %v1149, %v1151
        %v1153 = vadd.f32 %v1149, %v1152
        %vm1154 = vweird.f32 %v1102
        %vm1155 = vweird.f32 %v1149
        %vm1156 = vmor %vm1154, %vm1155
        %v1157 = vsel %vm1156, %v1149, %v1153
        %v1158 = vand.u32 2147483647, %v1102
        %vm1159 = vcmp.eq.f32.partialorder %v1158, 8.507059e+37
        %v1160 = vand.u32 %v1102, 2147483648
        %v1161 = vor.u32 1.1754944e-38, %v1160
        %v1162 = vsel %vm1159, %v1161, %v1157
        %v1163 = vmul.f32 1.0, %v1162
        %v1164 = vrcp.pop %v1103
        %v1165 = vmul.f32 %v1103, %v1164
        %v1166 = vsub.f32 1.0, %v1165
        %v1167 = vmul.f32 %v1164, %v1166
        %v1168 = vadd.f32 %v1164, %v1167
        %vm1169 = vweird.f32 %v1103
        %vm1170 = vweird.f32 %v1164
        %vm1171 = vmor %vm1169, %vm1170
        %v1172 = vsel %vm1171, %v1164, %v1168
        %v1173 = vand.u32 2147483647, %v1103
        %vm1174 = vcmp.eq.f32.partialorder %v1173, 8.507059e+37
        %v1175 = vand.u32 %v1103, 2147483648
        %v1176 = vor.u32 1.1754944e-38, %v1175
        %v1177 = vsel %vm1174, %v1176, %v1172
        %v1178 = vmul.f32 1.0, %v1177
        %v1179 = vmul.f32 %v1002, %v1118
        %v1180 = vmul.f32 %v1022, %v1133
        %v1181 = vmul.f32 %v1042, %v1148
        %v1182 = vmul.f32 %v1062, %v1163
        %v1183 = vmul.f32 %v1082, %v1178
        %1184 = vset.pattern.permute.xlu0 2
        %1185 = vperm.xlu0 %1184, %v265
        %v1186 = vpop.permute.xlu0 %1185
        %1188 = vrot.lane.b32.xlu0 %v266, 116
        %v1189 = vpop.permute.xlu0 %1188
        %v1190 = vsel %vm981, %v1189, 0
        %1192 = vmatpush.msra.mxu0 0.0
        %1193 = vmatpush.msra.mxu0 0.0
        %1194 = vmatpush.msra.mxu0 0.0
        %1195 = vmatpush.msra.mxu0 0.0
        %1196 = vmatpush.msra.mxu0 0.0
        %1197 = vmatpush.msra.mxu0 0.0
        %1198 = vmatpush.msra.mxu0 0.0
        %1199 = vmatpush.msra.mxu0 0.0
        %1200 = vmatpush.msra.mxu0 0.0
        %1201 = vmatpush.msra.mxu0 0.0
        %1202 = vmatpush.msra.mxu0 0.0
        %1203 = vmatpush.msra.mxu0 0.0
        %1204 = vmatpush.msra.mxu0 0.0
        %1205 = vmatpush.msra.mxu0 0.0
        %1206 = vmatpush.msra.mxu0 0.0
        %1207 = vmatpush.msra.mxu0 %v1179
        %1208 = vmatmul.f32.gmra.mxu0 %v1190
        %v1209 = vpop.f32.mrf.mxu0
        %v1210 = vadd.f32 %v1186, %v1209
        %1211 = vdwg.mxu0
        %1212 = vmatpush.msra.mxu0 0.0
        %1213 = vmatpush.msra.mxu0 0.0
        %1214 = vmatpush.msra.mxu0 0.0
        %1215 = vmatpush.msra.mxu0 0.0
        %1216 = vmatpush.msra.mxu0 0.0
        %1217 = vmatpush.msra.mxu0 0.0
        %1218 = vmatpush.msra.mxu0 0.0
        %1219 = vmatpush.msra.mxu0 0.0
        %1220 = vmatpush.msra.mxu0 0.0
        %1221 = vmatpush.msra.mxu0 0.0
        %1222 = vmatpush.msra.mxu0 0.0
        %1223 = vmatpush.msra.mxu0 0.0
        %1224 = vmatpush.msra.mxu0 0.0
        %1225 = vmatpush.msra.mxu0 0.0
        %1226 = vmatpush.msra.mxu0 0.0
        %1227 = vmatpush.msra.mxu0 %v1180
        %1228 = vmatmul.f32.gmra.mxu0 %v1190
        %v1229 = vpop.f32.mrf.mxu0
        %v1230 = vadd.f32 %v1186, %v1229
        %1231 = vdwg.mxu0
        %1232 = vmatpush.msra.mxu0 0.0
        %1233 = vmatpush.msra.mxu0 0.0
        %1234 = vmatpush.msra.mxu0 0.0
        %1235 = vmatpush.msra.mxu0 0.0
        %1236 = vmatpush.msra.mxu0 0.0
        %1237 = vmatpush.msra.mxu0 0.0
        %1238 = vmatpush.msra.mxu0 0.0
        %1239 = vmatpush.msra.mxu0 0.0
        %1240 = vmatpush.msra.mxu0 0.0
        %1241 = vmatpush.msra.mxu0 0.0
        %1242 = vmatpush.msra.mxu0 0.0
        %1243 = vmatpush.msra.mxu0 0.0
        %1244 = vmatpush.msra.mxu0 0.0
        %1245 = vmatpush.msra.mxu0 0.0
        %1246 = vmatpush.msra.mxu0 0.0
        %1247 = vmatpush.msra.mxu0 %v1181
        %1248 = vmatmul.f32.gmra.mxu0 %v1190
        %v1249 = vpop.f32.mrf.mxu0
        %v1250 = vadd.f32 %v1186, %v1249
        %1251 = vdwg.mxu0
        %1252 = vmatpush.msra.mxu0 0.0
        %1253 = vmatpush.msra.mxu0 0.0
        %1254 = vmatpush.msra.mxu0 0.0
        %1255 = vmatpush.msra.mxu0 0.0
        %1256 = vmatpush.msra.mxu0 0.0
        %1257 = vmatpush.msra.mxu0 0.0
        %1258 = vmatpush.msra.mxu0 0.0
        %1259 = vmatpush.msra.mxu0 0.0
        %1260 = vmatpush.msra.mxu0 0.0
        %1261 = vmatpush.msra.mxu0 0.0
        %1262 = vmatpush.msra.mxu0 0.0
        %1263 = vmatpush.msra.mxu0 0.0
        %1264 = vmatpush.msra.mxu0 0.0
        %1265 = vmatpush.msra.mxu0 0.0
        %1266 = vmatpush.msra.mxu0 0.0
        %1267 = vmatpush.msra.mxu0 %v1182
        %1268 = vmatmul.f32.gmra.mxu0 %v1190
        %v1269 = vpop.f32.mrf.mxu0
        %v1270 = vadd.f32 %v1186, %v1269
        %1271 = vdwg.mxu0
        %1272 = vmatpush.msra.mxu0 0.0
        %1273 = vmatpush.msra.mxu0 0.0
        %1274 = vmatpush.msra.mxu0 0.0
        %1275 = vmatpush.msra.mxu0 0.0
        %1276 = vmatpush.msra.mxu0 0.0
        %1277 = vmatpush.msra.mxu0 0.0
        %1278 = vmatpush.msra.mxu0 0.0
        %1279 = vmatpush.msra.mxu0 0.0
        %1280 = vmatpush.msra.mxu0 0.0
        %1281 = vmatpush.msra.mxu0 0.0
        %1282 = vmatpush.msra.mxu0 0.0
        %1283 = vmatpush.msra.mxu0 0.0
        %1284 = vmatpush.msra.mxu0 0.0
        %1285 = vmatpush.msra.mxu0 0.0
        %1286 = vmatpush.msra.mxu0 0.0
        %1287 = vmatpush.msra.mxu0 %v1183
        %1288 = vmatmul.f32.gmra.mxu0 %v1190
        %v1289 = vpop.f32.mrf.mxu0
        %v1290 = vadd.f32 %v1186, %v1289
        %1291 = vdwg.mxu0
        %v1292 = vadd.f32 %v793, %v1210
        %v1293 = vadd.f32 %v794, %v1230
        %v1294 = vadd.f32 %v795, %v1250
        %v1295 = vadd.f32 %v796, %v1270
        %v1296 = vadd.f32 %v797, %v1290
        %vm1297 = vcmp.gt.f32.partialorder %v1292, 0.0
        %vm1298 = vcmp.gt.f32.partialorder %v1293, 0.0
        %vm1299 = vcmp.gt.f32.partialorder %v1294, 0.0
        %vm1300 = vcmp.gt.f32.partialorder %v1295, 0.0
        %vm1301 = vcmp.gt.f32.partialorder %v1296, 0.0
        %v1302 = vmul.f32 %v1292, 0.01
        %v1303 = vmul.f32 %v1293, 0.01
        %v1304 = vmul.f32 %v1294, 0.01
        %v1305 = vmul.f32 %v1295, 0.01
        %v1306 = vmul.f32 %v1296, 0.01
        %v1307 = vsel %vm1297, %v1292, %v1302
        %v1308 = vsel %vm1298, %v1293, %v1303
        %v1309 = vsel %vm1299, %v1294, %v1304
        %v1310 = vsel %vm1300, %v1295, %v1305
        %v1311 = vsel %vm1301, %v1296, %v1306
        %1312 = vst [vmem:[%s261] sm:$0xff] %v1307
        %1313 = vst [vmem:[%s261 + $0x8] sm:$0xff] %v1308
        %1314 = vst [vmem:[%s261 + $0x10] sm:$0xff] %v1309
        %1315 = vst [vmem:[%s261 + $0x18] sm:$0xff] %v1310
        %1316 = vst [vmem:[%s261 + $0x20] sm:$0xff] %v1311
        %s1317 = sand.u32 %s120, 1
        %s1318 = scalar_lea.sflag [#allocation4], %s1317
        %s1319 = sand.u32 %s120, 1
        %s1320 = smul.addr %s1319, 40
        %s1321 = scalar_lea.vmem [#allocation10], %s1320
        // Predicated region
        $region53: #{tpu_custom_call.1} parent=35 // pred_check
          %p1322 = pneg %p130
        $region54: #{tpu_custom_call.1} parent=35 // pred_check_branch
          %1324 = sbr.rel (%p1322) target = $region56
        $region55: #{tpu_custom_call.1} parent=35 // pred_region
          %1326 = vsyncadd %s1318, 0
          %s1327 = smul.addr %s23, 5
          %s1328 = smul.addr %s1327, 8
          %s1329 = scalar_lea.hbm %s4, %s1328
          %s1331 = sshll.u32 %s1321, 4
          %s1332 = int_to_ptr.vmem [resolvable:$true] %s1331
          %s1333 = sshll.u32 %s1329, 4
          %s1334 = int_to_ptr.hbm [resolvable:$true] %s1333
          %1336 = dma.vmem_to_hbm [thread:$0]  %s1332, 640, %s1334, %s1318
        $region56: #{tpu_custom_call.1} parent=35 // pred_fallthru
          _
      $region36: #{tpu_custom_call.1} parent=5 // pred_fallthru
        _
      %p1337 = scmp.le.s32.totalorder 2, %s18
      // Predicated region
      $region57: #{tpu_custom_call.1} parent=5 // pred_check
        %p1338 = pneg %p1337
      $region58: #{tpu_custom_call.1} parent=5 // pred_check_branch
        %1340 = sbr.rel (%p1338) target = $region60
      $region59: #{tpu_custom_call.1} parent=5 // pred_region
        %s1341 = ssub.s32 %s18, 2
        // Predicated region
        $region61: #{tpu_custom_call.1} parent=59 // pred_check
          %p1342 = pneg %p136
        $region62: #{tpu_custom_call.1} parent=59 // pred_check_branch
          %1344 = sbr.rel (%p1342) target = $region64
        $region63: #{tpu_custom_call.1} parent=59 // pred_region
          %s1345 = sand.u32 %s121, 1
          %s1346 = scalar_lea.sflag [#allocation4], %s1345
          %s1347 = sand.u32 %s121, 1
          %s1348 = smul.addr %s1347, 40
          %s1349 = scalar_lea.vmem [#allocation10], %s1348
          %1351 = dma.done %s1346, 640
        $region64: #{tpu_custom_call.1} parent=59 // pred_fallthru
          _
      $region60: #{tpu_custom_call.1} parent=5 // pred_fallthru
        _
    $region6: #{tpu_custom_call.1} parent=1 // loop_footer
      %s22 = sadd.s32 1, %s18
    $region7: #{tpu_custom_call.1} parent=1 // loop_footer_branch
      %17 = sbr.rel target = $region3
    $region8: #{tpu_custom_call.1} parent=1 // loop_exit
      _
    %1352 = vsyncpa [#allocation3], 1
    %s1353 = scalar_lea.sflag [#allocation3], 1
    %1354 = vsyncpa %s1353, 1
    %1355 = vsyncpa [#allocation6], 1
    %1356 = vsyncpa [#allocation9], 1
    %1357 = vsyncpa [#allocation4], 1
    %s1358 = scalar_lea.sflag [#allocation4], 1
    %1359 = vsyncpa %s1358, 1

</llo_original>
